<compile_context>
chip_gen: v5e
topology: v5e:2x2
jax: 0.10.0
libtpu: 0.0.40
codegen_flags: <defaults>
</compile_context>

<pallas_src>
import jax
import jax.numpy as jnp
from jax import lax
from jax.experimental import pallas as pl
from jax.experimental.pallas import tpu as pltpu


def _round_up(x, m):
    return (x + m - 1) // m * m


def _vmem_capacity_bytes():
    """Per-core VMEM capacity; conservative fallback if the query fails."""
    try:
        return int(pltpu.get_tpu_info().vmem_capacity_bytes)
    except Exception:
        return 64 * 1024 * 1024          # v7x per-TensorCore VMEM (smallest gen)


def _default_compute_dtype():
    """bf16 matmul inputs by default on v5e (f32 MXU is multi-pass there)."""
    try:
        kind = jax.devices()[0].device_kind.lower()
    except Exception:
        return jnp.float32
    if "v5 lite" in kind or "v5e" in kind or "v5litepod" in kind:
        return jnp.bfloat16
    return jnp.float32


def _choose_tiling(batch, seq, d, key_bytes, w_bytes, tq_max):
    """Pick the query tile from a per-grid-step VMEM footprint model."""
    s_base = _round_up(seq, 128)                      # lane-dense key axis
    vmem_cap = _vmem_capacity_bytes()
    budget = min(vmem_cap // 2, 96 * 1024 * 1024)     # ~32 MiB on v7x, 64 MiB on v5e/v6e

    def footprint(tq, s_pad):
        key_blk = d * s_pad * key_bytes               # resident key block (single buffer)
        w_out = 2 * tq * s_pad * w_bytes              # double-buffered weights out-block
        ctx_out = 2 * tq * d * 4                      # double-buffered contexts out-block
        temps = tq * s_pad * (4 + 4 + key_bytes)      # scores, e (f32), e cast
        return key_blk + w_out + ctx_out + temps

    cands = [c for c in (512, 256, 128) if c <= min(tq_max, s_base)] or [128]
    tq = cands[-1]
    for c in cands:
        if footprint(c, _round_up(s_base, c)) <= budget:
            tq = c
            break
    # v7x megacore: keep at least 2 parallel grid steps when the shape allows.
    while tq > 128 and batch * (_round_up(s_base, tq) // tq) < 2:
        tq //= 2
    s_pad = _round_up(s_base, tq)
    fp = footprint(tq, s_pad)
    vmem_limit = int(min(0.9 * vmem_cap, max(2 * fp, 32 * 1024 * 1024)))
    return tq, s_pad, vmem_limit


def _make_kernel(s_real, s_pad, tq, compute_dtype, keys_transposed):
    matmul_precision = (jax.lax.Precision.HIGHEST
                        if compute_dtype == jnp.float32 else None)

    def kernel(lens_ref, hk_ref, ctx_ref, w_ref):
        # lens_ref: SMEM int32 [B]        (scalar prefetch)
        # hk_ref:   VMEM key block        (1, D, s_pad) if transposed else (1, s_pad, D)
        # ctx_ref:  VMEM (1, tq, D)
        # w_ref:    VMEM (1, tq, s_pad)
        b = pl.program_id(0)
        q_start = pl.multiple_of(pl.program_id(1) * tq, tq)
        L = jnp.minimum(lens_ref[b], s_real)          # defensive clamp (lens > S)

        if keys_transposed:
            hk = hk_ref[0]                            # (D, s_pad)
            hq = hk_ref[0, :, pl.ds(q_start, tq)]     # (D, tq)  query tile slice
            # scores = hq^T @ hk (contract D); no materialized transpose.
            scores = lax.dot_general(
                hq, hk, (((0,), (0,)), ((), ())),
                precision=matmul_precision,
                preferred_element_type=jnp.float32)   # (tq, s_pad)
        else:
            hk = hk_ref[0]                            # (s_pad, D)
            hq = hk_ref[0, pl.ds(q_start, tq), :]     # (tq, D)
            scores = lax.dot_general(
                hq, hk, (((1,), (1,)), ((), ())),
                precision=matmul_precision,
                preferred_element_type=jnp.float32)   # (tq, s_pad)

        # Key mask (replacement, matching torch masked_fill_):
        #   valid keys (j < L)            -> raw score
        #   real-but-masked keys (j < S)  -> -1e8
        #   padding columns (j >= S)      -> -3e38 (weight underflows to exact 0)
        key_idx = lax.broadcasted_iota(jnp.int32, (1, s_pad), 1)
        masked_val = jnp.where(key_idx < s_real,
                               jnp.float32(-1e8), jnp.float32(-3e38))
        scores = jnp.where(key_idx < L, scores, masked_val)

        # Softmax over keys in f32; normalize after the PV matmul.
        m = jnp.max(scores, axis=-1, keepdims=True)
        e = jnp.exp(scores - m)                       # (tq, s_pad)
        s = jnp.sum(e, axis=-1, keepdims=True)        # (tq, 1)
        inv_s = pl.reciprocal(s)                      # exact reciprocal

        e_c = e.astype(compute_dtype)
        if keys_transposed:
            ctx = lax.dot_general(
                e_c, hk, (((1,), (1,)), ((), ())),
                precision=matmul_precision,
                preferred_element_type=jnp.float32)   # (tq, D)
        else:
            ctx = lax.dot_general(
                e_c, hk, (((1,), (0,)), ((), ())),
                precision=matmul_precision,
                preferred_element_type=jnp.float32)   # (tq, D)

        ctx_ref[0] = (ctx * inv_s).astype(ctx_ref.dtype)
        w_ref[0] = (e * inv_s).astype(w_ref.dtype)

    return kernel


def self_attention(h, h_lens, *, compute_dtype=None, weights_dtype=jnp.bfloat16,
                   tq_max=512, trim_outputs=True, single_buffer_keys=True):
    """Pallas self-attention matching the PyTorch SelfAttention module ('dot').

    h:             [B, S, D] float32
    h_lens:        [B] int32 key lengths
    compute_dtype: matmul-input dtype (None -> f32, or bf16 on v5e). Softmax
                   math and matmul accumulation are always f32.
    weights_dtype: dtype of the returned attention weights. Default bf16: for
                   nontrivial S the kernel is HBM-writeback bound on the
                   B*S^2 weights, so bf16 halves the dominant traffic.
    trim_outputs:  if False, return padded (B, S_pad, D)/(B, S_pad, S_pad)
                   arrays and skip the post-kernel slice copies.
    returns (contexts [B, S, D], attn_weights [B, S, S])
    """
    B, S, D = h.shape
    h_lens = h_lens.astype(jnp.int32)
    if compute_dtype is None:
        compute_dtype = _default_compute_dtype()
    if weights_dtype is None:
        weights_dtype = h.dtype

    key_bytes = jnp.dtype(compute_dtype).itemsize
    w_bytes = jnp.dtype(weights_dtype).itemsize
    tq, s_pad, vmem_limit = _choose_tiling(B, S, D, key_bytes, w_bytes, tq_max)
    n_q = s_pad // tq

    # Cast once in the wrapper, pad the sequence axis to a lane-dense multiple
    # of the query tile, and (for D < 128) transpose so the resident key block
    # has its last dim a multiple of 128.
    keys_transposed = D < 128
    hk = h.astype(compute_dtype) if h.dtype != compute_dtype else h
    if s_pad != S:
        hk = jnp.pad(hk, ((0, 0), (0, s_pad - S), (0, 0)))
    if keys_transposed:
        hk = jnp.transpose(hk, (0, 2, 1))             # (B, D, s_pad)
        key_block = (1, D, s_pad)
    else:
        key_block = (1, s_pad, D)

    key_spec_kwargs = {}
    if single_buffer_keys:
        # The key block only changes on the batch axis; a second pipeline
        # buffer is pure VMEM cost (matters on v7x's 64 MiB/TC budget).
        key_spec_kwargs["pipeline_mode"] = pl.Buffered(1)
    key_spec = pl.BlockSpec(key_block, lambda b, q, lens: (b, 0, 0),
                            **key_spec_kwargs)

    kernel = _make_kernel(S, s_pad, tq, compute_dtype, keys_transposed)

    grid_spec = pltpu.PrefetchScalarGridSpec(
        num_scalar_prefetch=1,
        grid=(B, n_q),
        in_specs=[key_spec],
        out_specs=[
            pl.BlockSpec((1, tq, D), lambda b, q, lens: (b, q, 0)),
            pl.BlockSpec((1, tq, s_pad), lambda b, q, lens: (b, q, 0)),
        ],
    )

    ctx_p, w_p = pl.pallas_call(
        kernel,
        out_shape=(
            jax.ShapeDtypeStruct((B, s_pad, D), h.dtype),
            jax.ShapeDtypeStruct((B, s_pad, s_pad), weights_dtype),
        ),
        grid_spec=grid_spec,
        compiler_params=pltpu.CompilerParams(
            dimension_semantics=("parallel", "parallel"),
            vmem_limit_bytes=vmem_limit,
        ),
    )(h_lens, hk)

    if trim_outputs and s_pad != S:
        # NOTE: this slice is an extra HBM round trip over the weights array
        # in XLA; performance-sensitive callers should pass trim_outputs=False
        # and consume the padded arrays (padded key columns are exactly 0).
        ctx_p = ctx_p[:, :S, :]
        w_p = w_p[:, :S, :S]
    return ctx_p, w_p


def self_attention_ref(h, h_lens):
    """Pure-JAX reference matching the PyTorch module (method='dot')."""
    B, S, D = h.shape
    hi = jax.lax.Precision.HIGHEST
    align = jnp.einsum("bnd,bmd->bnm", h, h, precision=hi)      # query x key
    key_idx = jnp.arange(S)[None, None, :]
    mask = key_idx < h_lens[:, None, None]
    align = jnp.where(mask, align, -1e8)
    w = jax.nn.softmax(align, axis=-1)
    ctx = jnp.einsum("bnm,bmd->bnd", w, h, precision=hi)
    return ctx, w


if __name__ == "__main__":
    # --- Case 1: small shapes consistent with the module (b x m x d) --------
    B, S, D = 2, 8, 32
    h = jax.random.normal(jax.random.PRNGKey(0), (B, S, D), dtype=jnp.float32)
    h_lens = jnp.array([8, 5], dtype=jnp.int32)

    ctx, w = self_attention(h, h_lens, compute_dtype=jnp.float32)
    jax.block_until_ready((ctx, w))
    ctx_r, w_r = self_attention_ref(h, h_lens)
    assert ctx.shape == (B, S, D) and w.shape == (B, S, S)
    assert jnp.allclose(ctx, ctx_r, atol=1e-4, rtol=1e-4)
    # Default weights dtype is bf16 (the HBM-writeback-dominated output).
    assert jnp.allclose(w.astype(jnp.float32), w_r, atol=5e-3, rtol=5e-3)

    # Exact f32-weights path.
    ctx32, w32 = self_attention(h, h_lens, compute_dtype=jnp.float32,
                                weights_dtype=jnp.float32)
    jax.block_until_ready((ctx32, w32))
    assert w32.dtype == jnp.float32
    assert jnp.allclose(w32, w_r, atol=1e-4, rtol=1e-4)

    # --- Case 2: >1 query tile, padded & length-masked keys -----------------
    B2, S2, D2 = 2, 300, 64
    h2 = jax.random.normal(jax.random.PRNGKey(1), (B2, S2, D2), dtype=jnp.float32)
    h2_lens = jnp.array([300, 137], dtype=jnp.int32)
    ctx2, w2 = self_attention(h2, h2_lens, compute_dtype=jnp.float32)
    jax.block_until_ready((ctx2, w2))
    ctx2_r, w2_r = self_attention_ref(h2, h2_lens)
    assert ctx2.shape == (B2, S2, D2) and w2.shape == (B2, S2, S2)
    assert jnp.allclose(ctx2, ctx2_r, atol=1e-4, rtol=1e-4)
    assert jnp.allclose(w2.astype(jnp.float32), w2_r, atol=5e-3, rtol=5e-3)

    # Padded-output path (skips the post-kernel slice copies).
    ctx2p, w2p = self_attention(h2, h2_lens, compute_dtype=jnp.float32,
                                trim_outputs=False)
    jax.block_until_ready((ctx2p, w2p))
    assert jnp.allclose(ctx2p[:, :S2, :], ctx2_r, atol=1e-4, rtol=1e-4)

    # bf16-matmul / f32-accumulate throughput path, accuracy-checked against a
    # reference evaluated on bf16-quantized inputs (isolates the intended input
    # rounding; real kernel bugs would show O(1) errors).
    h2_q = h2.astype(jnp.bfloat16).astype(jnp.float32)
    ctx2_rq, w2_rq = self_attention_ref(h2_q, h2_lens)
    ctx_bf, w_bf = self_attention(h2, h2_lens, compute_dtype=jnp.bfloat16)
    jax.block_until_ready((ctx_bf, w_bf))
    assert jnp.allclose(ctx_bf, ctx2_rq, atol=2e-2, rtol=2e-2)
    assert jnp.allclose(w_bf.astype(jnp.float32), w2_rq, atol=2e-2, rtol=2e-2)

    # TODO(synk): AttnScore 'general'/'concat'/'tri_concat' branches (learnable
    # linear layers) are not implemented; the module default used here is 'dot'.
    print("KERNEL_OK")
</pallas_src>

<mosaic_0001>
module attributes {stable_mosaic.version = 11 : i64} {
  func.func @kernel(%arg0: i32, %arg1: i32, %arg2: memref<2xi32, #tpu.memory_space<smem>>, %arg3: memref<1x32x128xf32, #tpu.memory_space<vmem>>, %arg4: memref<1x128x32xf32, #tpu.memory_space<vmem>>, %arg5: memref<1x128x128xbf16, #tpu.memory_space<vmem>>) attributes {dimension_semantics = [#tpu.dimension_semantics<parallel>, #tpu.dimension_semantics<parallel>], iteration_bounds = array<i64: 2, 1>, scalar_prefetch = 1 : i64, scratch_operands = 0 : i64, tpu.core_type = #tpu.core_type<tc>, window_params = [{pipeline_mode = #tpu.pipeline_mode<synchronous>, transform_indices = @transform_0, window_bounds = array<i64: 1, 32, 128>}, {transform_indices = @transform_1, window_bounds = array<i64: 1, 128, 32>}, {transform_indices = @transform_2, window_bounds = array<i64: 1, 128, 128>}]} {
    %c128_i32 = arith.constant 128 : i32
    %0 = arith.muli %arg1, %c128_i32 : i32
    %1 = tpu.assume_multiple %0, 128 : i32
    %2 = arith.index_cast %arg0 : i32 to index
    %3 = memref.load %arg2[%2] : memref<2xi32, #tpu.memory_space<smem>>
    %c8_i32 = arith.constant 8 : i32
    %4 = arith.minsi %3, %c8_i32 : i32
    %c0 = arith.constant 0 : index
    %c0_0 = arith.constant 0 : index
    %c0_1 = arith.constant 0 : index
    %5 = vector.load %arg3[%c0, %c0_0, %c0_1] : memref<1x32x128xf32, #tpu.memory_space<vmem>>, vector<1x32x128xf32>
    %6 = vector.shape_cast %5 : vector<1x32x128xf32> to vector<32x128xf32>
    %c0_2 = arith.constant 0 : index
    %c0_3 = arith.constant 0 : index
    %7 = arith.index_cast %1 : i32 to index
    %8 = vector.load %arg3[%c0_2, %c0_3, %7] : memref<1x32x128xf32, #tpu.memory_space<vmem>>, vector<1x32x128xf32>
    %9 = vector.shape_cast %8 : vector<1x32x128xf32> to vector<32x128xf32>
    %cst = arith.constant dense<0.000000e+00> : vector<128x128xf32>
    %10 = tpu.matmul %9, %6, %cst {dimension_numbers = #tpu.dot_dimension_numbers<[0], [0], [1], [1], [0, 1, 1, 1], [], []>, precision = #tpu.contract_precision<fp32>} : vector<32x128xf32>, vector<32x128xf32>, vector<128x128xf32> -> vector<128x128xf32>
    %11 = tpu.iota {dimensions = array<i32: 1>} : vector<1x128xi32>
    %c8_i32_4 = arith.constant 8 : i32
    %12 = vector.broadcast %c8_i32_4 : i32 to vector<1x128xi32>
    %13 = arith.cmpi slt, %11, %12 : vector<1x128xi32>
    %cst_5 = arith.constant -1.000000e+08 : f32
    %cst_6 = arith.constant -3.000000e+38 : f32
    %14 = vector.broadcast %cst_5 : f32 to vector<1x128xf32>
    %15 = vector.broadcast %cst_6 : f32 to vector<1x128xf32>
    %16 = arith.select %13, %14, %15 : vector<1x128xi1>, vector<1x128xf32>
    %17 = vector.broadcast %4 : i32 to vector<1x128xi32>
    %18 = arith.cmpi slt, %11, %17 : vector<1x128xi32>
    %19 = vector.shape_cast %18 : vector<1x128xi1> to vector<1x128xi1>
    %20 = vector.broadcast %19 : vector<1x128xi1> to vector<128x128xi1>
    %21 = vector.shape_cast %16 : vector<1x128xf32> to vector<1x128xf32>
    %22 = vector.broadcast %21 : vector<1x128xf32> to vector<128x128xf32>
    %23 = arith.select %20, %10, %22 : vector<128x128xi1>, vector<128x128xf32>
    %cst_7 = arith.constant dense<0xFF800000> : vector<128xf32>
    %24 = vector.multi_reduction <maximumf>, %23, %cst_7 [1] : vector<128x128xf32> to vector<128xf32>
    %25 = vector.shape_cast %24 : vector<128xf32> to vector<128x1xf32>
    %26 = vector.broadcast %25 : vector<128x1xf32> to vector<128x128xf32>
    %27 = arith.subf %23, %26 : vector<128x128xf32>
    %28 = math.exp %27 : vector<128x128xf32>
    %cst_8 = arith.constant dense<0.000000e+00> : vector<128xf32>
    %29 = vector.multi_reduction <add>, %28, %cst_8 [1] : vector<128x128xf32> to vector<128xf32>
    %30 = vector.shape_cast %29 : vector<128xf32> to vector<128x1xf32>
    %31 = tpu.reciprocal %30 : vector<128x1xf32> -> vector<128x1xf32>
    %cst_9 = arith.constant dense<0.000000e+00> : vector<128x32xf32>
    %32 = tpu.matmul %28, %6, %cst_9 {dimension_numbers = #tpu.dot_dimension_numbers<[1], [1], [0], [0], [0, 0, 1, 0], [], []>, precision = #tpu.contract_precision<fp32>} : vector<128x128xf32>, vector<32x128xf32>, vector<128x32xf32> -> vector<128x32xf32>
    %33 = vector.broadcast %31 : vector<128x1xf32> to vector<128x32xf32>
    %34 = arith.mulf %32, %33 : vector<128x32xf32>
    %c0_10 = arith.constant 0 : index
    %c0_11 = arith.constant 0 : index
    %c0_12 = arith.constant 0 : index
    %35 = vector.load %arg4[%c0_10, %c0_11, %c0_12] : memref<1x128x32xf32, #tpu.memory_space<vmem>>, vector<1x128x32xf32>
    %36 = vector.shape_cast %35 : vector<1x128x32xf32> to vector<128x32xf32>
    %37 = vector.shape_cast %34 : vector<128x32xf32> to vector<1x128x32xf32>
    tpu.vector_store %arg4[%c0_10, %c0_11, %c0_12], %37 {strides = array<i32>} : memref<1x128x32xf32, #tpu.memory_space<vmem>>, vector<1x128x32xf32>,
    %38 = vector.broadcast %31 : vector<128x1xf32> to vector<128x128xf32>
    %39 = arith.mulf %28, %38 : vector<128x128xf32>
    %40 = arith.truncf %39 : vector<128x128xf32> to vector<128x128xbf16>
    %c0_13 = arith.constant 0 : index
    %c0_14 = arith.constant 0 : index
    %c0_15 = arith.constant 0 : index
    %41 = vector.load %arg5[%c0_13, %c0_14, %c0_15] : memref<1x128x128xbf16, #tpu.memory_space<vmem>>, vector<1x128x128xbf16>
    %42 = vector.shape_cast %41 : vector<1x128x128xbf16> to vector<128x128xbf16>
    %43 = vector.shape_cast %40 : vector<128x128xbf16> to vector<1x128x128xbf16>
    tpu.vector_store %arg5[%c0_13, %c0_14, %c0_15], %43 {strides = array<i32>} : memref<1x128x128xbf16, #tpu.memory_space<vmem>>, vector<1x128x128xbf16>,
    return
  }
  func.func @transform_0(%arg0: i32, %arg1: i32, %arg2: memref<2xi32, #tpu.memory_space<smem>>) -> (i32, i32, i32) {
    %c0_i32 = arith.constant 0 : i32
    %c0_i32_0 = arith.constant 0 : i32
    %c0_i32_1 = arith.constant 0 : i32
    return %arg0, %c0_i32, %c0_i32_0 : i32, i32, i32
  }
  func.func @transform_1(%arg0: i32, %arg1: i32, %arg2: memref<2xi32, #tpu.memory_space<smem>>) -> (i32, i32, i32) {
    %c0_i32 = arith.constant 0 : i32
    %c0_i32_0 = arith.constant 0 : i32
    return %arg0, %arg1, %c0_i32 : i32, i32, i32
  }
  func.func @transform_2(%arg0: i32, %arg1: i32, %arg2: memref<2xi32, #tpu.memory_space<smem>>) -> (i32, i32, i32) {
    %c0_i32 = arith.constant 0 : i32
    %c0_i32_0 = arith.constant 0 : i32
    return %arg0, %arg1, %c0_i32 : i32, i32, i32
  }
}

</mosaic_0001>

<llo_original>
// kernel: tpu_custom_call.1
$region0: #{tpu_custom_call.1}
  #allocation0 [shape = 'u32[]', space=smem, size = 0x4, offset = 0x4, fixed_abs, tag = 'smem constant byte address 0x4 - core index']
  #allocation1 [shape = 'u32[72,128]{1,0:T(1,128)}', space=vmem, size = 0x9000, scoped, tag = 'internal scratch']
  #allocation2 [shape = 's32[1]{0}', space=sflag, size = 0x4, scoped, tag = 'scoped memory for tpu_custom_call.1']
  #allocation3 [shape = 'u8[512]{0}', space=smem, size = 0x200, scoped, tag = 'prefetched SMEM operand 0']
  %s0 = inlined_call_operand.hbm [shape: s32[2], index: 0, kind: input, shape index: {}]
  %s1 = inlined_call_operand.hbm [shape: f32[2,32,128], index: 1, kind: input, shape index: {}]
  %s2 = inlined_call_operand.vmem [shape: f32[2,128,32], index: 2, kind: output, shape index: {0}]
  %s3 = inlined_call_operand.hbm [shape: bf16[2,128,128], index: 3, kind: output, shape index: {1}]
  %4 = xla_tuple %s2, %s3
  %s5 = sld [smem:[#allocation0]]
  $region49: #{tpu_custom_call.1} parent=0
    _
  %s7 = ssub.s32 1, %s5
  %s8 = scalar_select 0, %s7, %s5
  %s10 = sshll.u32 %s0, 4
  %s11 = int_to_ptr.hbm [resolvable:$true] %s10
  %13 = dma.hbm_to_smem %s11, 16, [#allocation3], [#allocation2]
  %15 = dma.done [#allocation2], 16
  %16 = sfence
  $region1: #{tpu_custom_call.1} parent=0
    #allocation4 [shape = 'u8[16384]{0}', space=vmem, size = 0x4000, scoped, tag = 'input window, operand 1, single buffered']
    #allocation5 [shape = 's32[2]{0}', space=sflag, size = 0x8, scoped, tag = 'scoped memory for tpu_custom_call.1']
    #allocation6 [shape = 's32[2]{0}', space=sflag, size = 0x8, scoped, tag = 'scoped memory for tpu_custom_call.1']
    #allocation7 [shape = 'u8[65536]{0}', space=vmem, size = 0x10000, scoped, tag = 'output window, operand 1']
    %17 = vsyncpa [#allocation5], 0
    %18 = vsyncpa [#allocation6], 0
    %s19 = scalar_lea.sflag [#allocation6], 1
    %20 = vsyncpa %s19, 0
    loop: start=0, step=1, limit=4
    $region2: #{tpu_custom_call.1} parent=1 // loop_pre_header
      _
    $region3: #{tpu_custom_call.1} parent=1 // loop_header
      %s22 = sphi 0, %s26
      %p23 = scmp.ge.s32.totalorder %s22, 4
      %s29 = sphi 0, %s41
      %s30 = sphi 0, %s37
      %s31 = sphi 0, %s29
      %s32 = sphi 0, %s30
      %s33 = sphi 0, %s31
      %s34 = sphi 0, %s32
      %s44 = sphi 0, %s46
      %s47 = sphi 0, %s44
      %s48 = sphi 0, %s47
      %s64 = sphi 0, %s48
      %s72 = sphi 0, %s74
      %s75 = sphi 0, %s72
      %s76 = sphi 0, %s75
      %s92 = sphi 0, %s76
      %s100 = sphi 0, %s102
      %s103 = sphi 0, %s100
      %s104 = sphi 0, %s103
      %s120 = sphi 0, %s104
    $region4: #{tpu_custom_call.1} parent=1 // loop_header_branch
      %25 = sbr.rel (%p23) target = $region8
    $region5: #{tpu_custom_call.1} parent=1 // loop_body
      %s27 = ssub.s32 %s22, 1
      %s28 = ssub.s32 %s22, 2
      %s35 = sadd.s32 1, %s30
      %p36 = scmp.ge.s32.totalorder %s35, 1
      %s37 = scalar_select %p36, 0, %s35
      %s38 = sadd.s32 1, %s29
      %s39 = scalar_select %p36, %s38, %s29
      %p40 = scmp.ge.s32.totalorder %s39, 2
      %s41 = scalar_select %p40, 0, %s39
      %s42 = ssub.s32 %s29, %s41
      %p43 = scmp.eq.s32.totalorder %s42, 0
      %s45 = sadd.s32 %s44, 1
      %s46 = scalar_select %p43, %s44, %s45
      %p49 = pneg %p43
      %p50 = scmp.eq.s32.totalorder %s22, 1
      %p51 = por %p49, %p50
      %p52 = scmp.ne.s32.totalorder %s44, %s47
      %p53 = scmp.eq.s32.totalorder %s22, 0
      %p54 = por %p52, %p53
      %p55 = scmp.ne.s32.totalorder %s44, %s47
      %p56 = scmp.eq.s32.totalorder %s27, 1
      %p57 = por %p55, %p56
      %p58 = scmp.ne.s32.totalorder %s47, %s48
      %p59 = scmp.eq.s32.totalorder %s27, 0
      %p60 = por %p58, %p59
      %p61 = scmp.ne.s32.totalorder %s47, %s48
      %p62 = scmp.eq.s32.totalorder %s28, 1
      %p63 = por %p61, %p62
      %p65 = scmp.ne.s32.totalorder %s48, %s64
      %p66 = scmp.eq.s32.totalorder %s28, 0
      %p67 = por %p65, %p66
      %s68 = ssub.s32 %s29, %s41
      %s69 = ssub.s32 %s30, %s37
      %s70 = sor.u32 %s68, %s69
      %p71 = scmp.eq.s32.totalorder %s70, 0
      %s73 = sadd.s32 %s72, 1
      %s74 = scalar_select %p71, %s72, %s73
      %p77 = pneg %p71
      %p78 = scmp.eq.s32.totalorder %s22, 1
      %p79 = por %p77, %p78
      %p80 = scmp.ne.s32.totalorder %s72, %s75
      %p81 = scmp.eq.s32.totalorder %s22, 0
      %p82 = por %p80, %p81
      %p83 = scmp.ne.s32.totalorder %s72, %s75
      %p84 = scmp.eq.s32.totalorder %s27, 1
      %p85 = por %p83, %p84
      %p86 = scmp.ne.s32.totalorder %s75, %s76
      %p87 = scmp.eq.s32.totalorder %s27, 0
      %p88 = por %p86, %p87
      %p89 = scmp.ne.s32.totalorder %s75, %s76
      %p90 = scmp.eq.s32.totalorder %s28, 1
      %p91 = por %p89, %p90
      %p93 = scmp.ne.s32.totalorder %s76, %s92
      %p94 = scmp.eq.s32.totalorder %s28, 0
      %p95 = por %p93, %p94
      %s96 = ssub.s32 %s29, %s41
      %s97 = ssub.s32 %s30, %s37
      %s98 = sor.u32 %s96, %s97
      %p99 = scmp.eq.s32.totalorder %s98, 0
      %s101 = sadd.s32 %s100, 1
      %s102 = scalar_select %p99, %s100, %s101
      %p105 = pneg %p99
      %p106 = scmp.eq.s32.totalorder %s22, 1
      %p107 = por %p105, %p106
      %p108 = scmp.ne.s32.totalorder %s100, %s103
      %p109 = scmp.eq.s32.totalorder %s22, 0
      %p110 = por %p108, %p109
      %p111 = scmp.ne.s32.totalorder %s100, %s103
      %p112 = scmp.eq.s32.totalorder %s27, 1
      %p113 = por %p111, %p112
      %p114 = scmp.ne.s32.totalorder %s103, %s104
      %p115 = scmp.eq.s32.totalorder %s27, 0
      %p116 = por %p114, %p115
      %p117 = scmp.ne.s32.totalorder %s103, %s104
      %p118 = scmp.eq.s32.totalorder %s28, 1
      %p119 = por %p117, %p118
      %p121 = scmp.ne.s32.totalorder %s104, %s120
      %p122 = scmp.eq.s32.totalorder %s28, 0
      %p123 = por %p121, %p122
      %p124 = scmp.le.s32.totalorder 1, %s22
      %p125 = scmp.lt.s32.totalorder %s22, 3
      %p126 = pnand %p124, %p125
      %p127 = pneg %p126
      // Predicated region
      $region9: #{tpu_custom_call.1} parent=5 // pred_check
        _
      $region10: #{tpu_custom_call.1} parent=5 // pred_check_branch
        %129 = sbr.rel (%p126) target = $region12
      $region11: #{tpu_custom_call.1} parent=5 // pred_region
        %s130 = ssub.s32 %s22, 1
        // Predicated region
        $region13: #{tpu_custom_call.1} parent=11 // pred_check
          %p131 = pneg %p60
        $region14: #{tpu_custom_call.1} parent=11 // pred_check_branch
          %133 = sbr.rel (%p131) target = $region16
        $region15: #{tpu_custom_call.1} parent=11 // pred_region
          %135 = vsyncadd [#allocation5], 0
          %s136 = smul.addr %s31, 4
          %s137 = smul.addr %s136, 8
          %s138 = scalar_lea.hbm %s1, %s137
          %s139 = sshll.u32 %s138, 4
          %s140 = int_to_ptr.hbm [resolvable:$true] %s139
          %s141 = sshll.u32 [#allocation4], 4
          %s142 = int_to_ptr.vmem [resolvable:$true] %s141
          %147 = dma.hbm_to_vmem [thread:$0]  %s140, 512, %s142, [#allocation5], 128, 128, 8
        $region16: #{tpu_custom_call.1} parent=11 // pred_fallthru
          _
      $region12: #{tpu_custom_call.1} parent=5 // pred_fallthru
        _
      %p148 = scmp.lt.s32.totalorder %s22, 2
      // Predicated region
      $region17: #{tpu_custom_call.1} parent=5 // pred_check
        %p149 = pneg %p148
      $region18: #{tpu_custom_call.1} parent=5 // pred_check_branch
        %151 = sbr.rel (%p149) target = $region20
      $region19: #{tpu_custom_call.1} parent=5 // pred_region
        _
      $region20: #{tpu_custom_call.1} parent=5 // pred_fallthru
        _
      %p152 = scmp.le.s32.totalorder 1, %s22
      %p153 = scmp.lt.s32.totalorder %s22, 3
      %p154 = pnand %p152, %p153
      %p155 = pneg %p154
      // Predicated region
      $region21: #{tpu_custom_call.1} parent=5 // pred_check
        _
      $region22: #{tpu_custom_call.1} parent=5 // pred_check_branch
        %157 = sbr.rel (%p154) target = $region24
      $region23: #{tpu_custom_call.1} parent=5 // pred_region
        %s158 = ssub.s32 %s22, 1
        // Predicated region
        $region25: #{tpu_custom_call.1} parent=23 // pred_check
          %p159 = pneg %p60
        $region26: #{tpu_custom_call.1} parent=23 // pred_check_branch
          %161 = sbr.rel (%p159) target = $region28
        $region27: #{tpu_custom_call.1} parent=23 // pred_region
          %163 = dma.done [#allocation5], 512
        $region28: #{tpu_custom_call.1} parent=23 // pred_fallthru
          _
        %p164 = pneg %p60
        %p165 = pneg %p57
        %p166 = pneg %p88
        %p167 = pneg %p85
        %s168 = smul.u32 16, %s32
        %p169 = scmp.lt.s32.totalorder %s31, 1
        %s170 = scalar_select %p169, %s31, 1
        %p171 = scmp.lt.s32.totalorder %s168, 15
        %s172 = scalar_select %p171, %s168, 15
        %s173 = smul.addr %s170, 16
        %s174 = sadd.s32 %s172, %s173
        %s175 = smul.addr %s174, 8
        %s176 = scalar_lea.vmem %s2, %s175
        %p177 = pneg %p116
        %p178 = pneg %p113
        %s179 = sand.u32 %s103, 1
        %s180 = scalar_lea.sflag [#allocation6], %s179
        %s181 = sand.u32 %s103, 1
        %s182 = smul.addr %s181, 64
        %s183 = scalar_lea.vmem [#allocation7], %s182
        %s184 = smul.u32 16, %s32
        %p185 = scmp.lt.s32.totalorder %s31, 1
        %s186 = scalar_select %p185, %s31, 1
        %p187 = scmp.lt.s32.totalorder %s184, 15
        %s188 = scalar_select %p187, %s184, 15
        %s189 = smul.addr %s186, 16
        %s190 = sadd.s32 %s188, %s189
        %s191 = smul.addr %s190, 8
        %s192 = scalar_lea.vmem %s2, %s191
        %s193 = smul.u32 16, %s32
        %s194 = smul.u32 16, %s32
        %s195 = smul.u32 %s32, 128
        %s196 = sld [smem:[#allocation3 + %s31]]
        %p197 = scmp.lt.s32.totalorder %s196, 8
        %s198 = scalar_select %p197, %s196, 8
        %v199 = vld [vmem:[#allocation4] sm:$0xff]
        %v200 = vld [vmem:[#allocation4 + $0x8] sm:$0xff]
        %v201 = vld [vmem:[#allocation4 + $0x10] sm:$0xff]
        %v202 = vld [vmem:[#allocation4 + $0x18] sm:$0xff]
        %s203 = sshra.s32 %s195, 7
        %s204 = sand.u32 %s195, 127
        %s205 = scalar_lea.vmem [#allocation4], %s203
        %v206 = vld [vmem:[%s205] sm:$0xff]
        %v207 = vld [vmem:[%s205 + $0x8] sm:$0xff]
        %v208 = vld [vmem:[%s205 + $0x10] sm:$0xff]
        %v209 = vld [vmem:[%s205 + $0x18] sm:$0xff]
        %210 = vxpose.xlu0.b32.start [1/16] %v206, 128
        %211 = vxpose.xlu0.b32.cont [2/16] %v207, 128
        %212 = vxpose.xlu0.b32.cont [3/16] %v208, 128
        %213 = vxpose.xlu0.b32.cont [4/16] %v209, 128
        %214 = vxpose.xlu0.b32.cont [5/16] 0.0, 128
        %215 = vxpose.xlu0.b32.cont [6/16] 0.0, 128
        %216 = vxpose.xlu0.b32.cont [7/16] 0.0, 128
        %217 = vxpose.xlu0.b32.cont [8/16] 0.0, 128
        %218 = vxpose.xlu0.b32.cont [9/16] 0.0, 128
        %219 = vxpose.xlu0.b32.cont [10/16] 0.0, 128
        %220 = vxpose.xlu0.b32.cont [11/16] 0.0, 128
        %221 = vxpose.xlu0.b32.cont [12/16] 0.0, 128
        %222 = vxpose.xlu0.b32.cont [13/16] 0.0, 128
        %223 = vxpose.xlu0.b32.cont [14/16] 0.0, 128
        %224 = vxpose.xlu0.b32.cont [15/16] 0.0, 128
        %225 = vxpose.xlu0.b32.end [16/16] 0.0, 128
        %v226 = vpop.trf.xlu0
        %v227 = vpop.trf.xlu0
        %v228 = vpop.trf.xlu0
        %v229 = vpop.trf.xlu0
        %v230 = vpop.trf.xlu0
        %v231 = vpop.trf.xlu0
        %v232 = vpop.trf.xlu0
        %v233 = vpop.trf.xlu0
        %v234 = vpop.trf.xlu0
        %v235 = vpop.trf.xlu0
        %v236 = vpop.trf.xlu0
        %v237 = vpop.trf.xlu0
        %v238 = vpop.trf.xlu0
        %v239 = vpop.trf.xlu0
        %v240 = vpop.trf.xlu0
        %v241 = vpop.trf.xlu0
        %vm242 = vcmask 261120
        %v244 = vsel %vm242, %v226, 0
        %v247 = vsel %vm242, %v227, 0
        %v250 = vsel %vm242, %v228, 0
        %v253 = vsel %vm242, %v229, 0
        %v256 = vsel %vm242, %v230, 0
        %v259 = vsel %vm242, %v231, 0
        %v262 = vsel %vm242, %v232, 0
        %v265 = vsel %vm242, %v233, 0
        %v268 = vsel %vm242, %v234, 0
        %v271 = vsel %vm242, %v235, 0
        %v274 = vsel %vm242, %v236, 0
        %v277 = vsel %vm242, %v237, 0
        %v280 = vsel %vm242, %v238, 0
        %v283 = vsel %vm242, %v239, 0
        %v286 = vsel %vm242, %v240, 0
        %v289 = vsel %vm242, %v241, 0
        %291 = vmatpush.msra.mxu0 0.0
        %292 = vmatpush.msra.mxu0 0.0
        %293 = vmatpush.msra.mxu0 0.0
        %294 = vmatpush.msra.mxu0 0.0
        %295 = vmatpush.msra.mxu0 0.0
        %296 = vmatpush.msra.mxu0 0.0
        %297 = vmatpush.msra.mxu0 0.0
        %298 = vmatpush.msra.mxu0 0.0
        %299 = vmatpush.msra.mxu0 0.0
        %300 = vmatpush.msra.mxu0 0.0
        %301 = vmatpush.msra.mxu0 0.0
        %302 = vmatpush.msra.mxu0 0.0
        %v303 = vand.u32 %v202, 4294901760
        %304 = vmatpush.msra.mxu0 %v303
        %v305 = vand.u32 %v201, 4294901760
        %306 = vmatpush.msra.mxu0 %v305
        %v307 = vand.u32 %v200, 4294901760
        %308 = vmatpush.msra.mxu0 %v307
        %v309 = vand.u32 %v199, 4294901760
        %310 = vmatpush.msra.mxu0 %v309
        %v311 = vand.u32 %v244, 4294901760
        %v312 = vsub.f32 %v244, %v311
        %v313 = vand.u32 %v312, 4294901760
        %v314 = vsub.f32 %v312, %v313
        %v315 = vand.u32 %v314, 4294901760
        %316 = vmatmul.f32.gmra.mxu0 %v315
        %v317 = vpop.f32.mrf.mxu0
        %v318 = vadd.f32 0.0, %v317
        %v319 = vand.u32 %v247, 4294901760
        %v320 = vsub.f32 %v247, %v319
        %v321 = vand.u32 %v320, 4294901760
        %v322 = vsub.f32 %v320, %v321
        %v323 = vand.u32 %v322, 4294901760
        %324 = vmatmul.f32.gmra.mxu0 %v323
        %v325 = vpop.f32.mrf.mxu0
        %v326 = vadd.f32 0.0, %v325
        %v327 = vand.u32 %v250, 4294901760
        %v328 = vsub.f32 %v250, %v327
        %v329 = vand.u32 %v328, 4294901760
        %v330 = vsub.f32 %v328, %v329
        %v331 = vand.u32 %v330, 4294901760
        %332 = vmatmul.f32.gmra.mxu0 %v331
        %v333 = vpop.f32.mrf.mxu0
        %v334 = vadd.f32 0.0, %v333
        %v335 = vand.u32 %v253, 4294901760
        %v336 = vsub.f32 %v253, %v335
        %v337 = vand.u32 %v336, 4294901760
        %v338 = vsub.f32 %v336, %v337
        %v339 = vand.u32 %v338, 4294901760
        %340 = vmatmul.f32.gmra.mxu0 %v339
        %v341 = vpop.f32.mrf.mxu0
        %v342 = vadd.f32 0.0, %v341
        %v343 = vand.u32 %v256, 4294901760
        %v344 = vsub.f32 %v256, %v343
        %v345 = vand.u32 %v344, 4294901760
        %v346 = vsub.f32 %v344, %v345
        %v347 = vand.u32 %v346, 4294901760
        %348 = vmatmul.f32.gmra.mxu0 %v347
        %v349 = vpop.f32.mrf.mxu0
        %v350 = vadd.f32 0.0, %v349
        %v351 = vand.u32 %v259, 4294901760
        %v352 = vsub.f32 %v259, %v351
        %v353 = vand.u32 %v352, 4294901760
        %v354 = vsub.f32 %v352, %v353
        %v355 = vand.u32 %v354, 4294901760
        %356 = vmatmul.f32.gmra.mxu0 %v355
        %v357 = vpop.f32.mrf.mxu0
        %v358 = vadd.f32 0.0, %v357
        %v359 = vand.u32 %v262, 4294901760
        %v360 = vsub.f32 %v262, %v359
        %v361 = vand.u32 %v360, 4294901760
        %v362 = vsub.f32 %v360, %v361
        %v363 = vand.u32 %v362, 4294901760
        %364 = vmatmul.f32.gmra.mxu0 %v363
        %v365 = vpop.f32.mrf.mxu0
        %v366 = vadd.f32 0.0, %v365
        %v367 = vand.u32 %v265, 4294901760
        %v368 = vsub.f32 %v265, %v367
        %v369 = vand.u32 %v368, 4294901760
        %v370 = vsub.f32 %v368, %v369
        %v371 = vand.u32 %v370, 4294901760
        %372 = vmatmul.f32.gmra.mxu0 %v371
        %v373 = vpop.f32.mrf.mxu0
        %v374 = vadd.f32 0.0, %v373
        %v375 = vand.u32 %v268, 4294901760
        %v376 = vsub.f32 %v268, %v375
        %v377 = vand.u32 %v376, 4294901760
        %v378 = vsub.f32 %v376, %v377
        %v379 = vand.u32 %v378, 4294901760
        %380 = vmatmul.f32.gmra.mxu0 %v379
        %v381 = vpop.f32.mrf.mxu0
        %v382 = vadd.f32 0.0, %v381
        %v383 = vand.u32 %v271, 4294901760
        %v384 = vsub.f32 %v271, %v383
        %v385 = vand.u32 %v384, 4294901760
        %v386 = vsub.f32 %v384, %v385
        %v387 = vand.u32 %v386, 4294901760
        %388 = vmatmul.f32.gmra.mxu0 %v387
        %v389 = vpop.f32.mrf.mxu0
        %v390 = vadd.f32 0.0, %v389
        %v391 = vand.u32 %v274, 4294901760
        %v392 = vsub.f32 %v274, %v391
        %v393 = vand.u32 %v392, 4294901760
        %v394 = vsub.f32 %v392, %v393
        %v395 = vand.u32 %v394, 4294901760
        %396 = vmatmul.f32.gmra.mxu0 %v395
        %v397 = vpop.f32.mrf.mxu0
        %v398 = vadd.f32 0.0, %v397
        %v399 = vand.u32 %v277, 4294901760
        %v400 = vsub.f32 %v277, %v399
        %v401 = vand.u32 %v400, 4294901760
        %v402 = vsub.f32 %v400, %v401
        %v403 = vand.u32 %v402, 4294901760
        %404 = vmatmul.f32.gmra.mxu0 %v403
        %v405 = vpop.f32.mrf.mxu0
        %v406 = vadd.f32 0.0, %v405
        %v407 = vand.u32 %v280, 4294901760
        %v408 = vsub.f32 %v280, %v407
        %v409 = vand.u32 %v408, 4294901760
        %v410 = vsub.f32 %v408, %v409
        %v411 = vand.u32 %v410, 4294901760
        %412 = vmatmul.f32.gmra.mxu0 %v411
        %v413 = vpop.f32.mrf.mxu0
        %v414 = vadd.f32 0.0, %v413
        %v415 = vand.u32 %v283, 4294901760
        %v416 = vsub.f32 %v283, %v415
        %v417 = vand.u32 %v416, 4294901760
        %v418 = vsub.f32 %v416, %v417
        %v419 = vand.u32 %v418, 4294901760
        %420 = vmatmul.f32.gmra.mxu0 %v419
        %v421 = vpop.f32.mrf.mxu0
        %v422 = vadd.f32 0.0, %v421
        %v423 = vand.u32 %v286, 4294901760
        %v424 = vsub.f32 %v286, %v423
        %v425 = vand.u32 %v424, 4294901760
        %v426 = vsub.f32 %v424, %v425
        %v427 = vand.u32 %v426, 4294901760
        %428 = vmatmul.f32.gmra.mxu0 %v427
        %v429 = vpop.f32.mrf.mxu0
        %v430 = vadd.f32 0.0, %v429
        %v431 = vand.u32 %v289, 4294901760
        %v432 = vsub.f32 %v289, %v431
        %v433 = vand.u32 %v432, 4294901760
        %v434 = vsub.f32 %v432, %v433
        %v435 = vand.u32 %v434, 4294901760
        %436 = vmatmul.f32.gmra.mxu0 %v435
        %v437 = vpop.f32.mrf.mxu0
        %v438 = vadd.f32 0.0, %v437
        %439 = vdwg.mxu0
        %440 = vmatpush.msra.mxu0 0.0
        %441 = vmatpush.msra.mxu0 0.0
        %442 = vmatpush.msra.mxu0 0.0
        %443 = vmatpush.msra.mxu0 0.0
        %444 = vmatpush.msra.mxu0 0.0
        %445 = vmatpush.msra.mxu0 0.0
        %446 = vmatpush.msra.mxu0 0.0
        %447 = vmatpush.msra.mxu0 0.0
        %448 = vmatpush.msra.mxu0 0.0
        %449 = vmatpush.msra.mxu0 0.0
        %450 = vmatpush.msra.mxu0 0.0
        %451 = vmatpush.msra.mxu0 0.0
        %v452 = vand.u32 %v202, 4294901760
        %v453 = vsub.f32 %v202, %v452
        %v454 = vand.u32 %v453, 4294901760
        %v455 = vsub.f32 %v453, %v454
        %v456 = vand.u32 %v455, 4294901760
        %457 = vmatpush.msra.mxu0 %v456
        %v458 = vand.u32 %v201, 4294901760
        %v459 = vsub.f32 %v201, %v458
        %v460 = vand.u32 %v459, 4294901760
        %v461 = vsub.f32 %v459, %v460
        %v462 = vand.u32 %v461, 4294901760
        %463 = vmatpush.msra.mxu0 %v462
        %v464 = vand.u32 %v200, 4294901760
        %v465 = vsub.f32 %v200, %v464
        %v466 = vand.u32 %v465, 4294901760
        %v467 = vsub.f32 %v465, %v466
        %v468 = vand.u32 %v467, 4294901760
        %469 = vmatpush.msra.mxu0 %v468
        %v470 = vand.u32 %v199, 4294901760
        %v471 = vsub.f32 %v199, %v470
        %v472 = vand.u32 %v471, 4294901760
        %v473 = vsub.f32 %v471, %v472
        %v474 = vand.u32 %v473, 4294901760
        %475 = vmatpush.msra.mxu0 %v474
        %v476 = vand.u32 %v244, 4294901760
        %477 = vmatmul.f32.gmra.mxu0 %v476
        %v478 = vpop.f32.mrf.mxu0
        %v479 = vadd.f32 %v318, %v478
        %v480 = vand.u32 %v247, 4294901760
        %481 = vmatmul.f32.gmra.mxu0 %v480
        %v482 = vpop.f32.mrf.mxu0
        %v483 = vadd.f32 %v326, %v482
        %v484 = vand.u32 %v250, 4294901760
        %485 = vmatmul.f32.gmra.mxu0 %v484
        %v486 = vpop.f32.mrf.mxu0
        %v487 = vadd.f32 %v334, %v486
        %v488 = vand.u32 %v253, 4294901760
        %489 = vmatmul.f32.gmra.mxu0 %v488
        %v490 = vpop.f32.mrf.mxu0
        %v491 = vadd.f32 %v342, %v490
        %v492 = vand.u32 %v256, 4294901760
        %493 = vmatmul.f32.gmra.mxu0 %v492
        %v494 = vpop.f32.mrf.mxu0
        %v495 = vadd.f32 %v350, %v494
        %v496 = vand.u32 %v259, 4294901760
        %497 = vmatmul.f32.gmra.mxu0 %v496
        %v498 = vpop.f32.mrf.mxu0
        %v499 = vadd.f32 %v358, %v498
        %v500 = vand.u32 %v262, 4294901760
        %501 = vmatmul.f32.gmra.mxu0 %v500
        %v502 = vpop.f32.mrf.mxu0
        %v503 = vadd.f32 %v366, %v502
        %v504 = vand.u32 %v265, 4294901760
        %505 = vmatmul.f32.gmra.mxu0 %v504
        %v506 = vpop.f32.mrf.mxu0
        %v507 = vadd.f32 %v374, %v506
        %v508 = vand.u32 %v268, 4294901760
        %509 = vmatmul.f32.gmra.mxu0 %v508
        %v510 = vpop.f32.mrf.mxu0
        %v511 = vadd.f32 %v382, %v510
        %v512 = vand.u32 %v271, 4294901760
        %513 = vmatmul.f32.gmra.mxu0 %v512
        %v514 = vpop.f32.mrf.mxu0
        %v515 = vadd.f32 %v390, %v514
        %v516 = vand.u32 %v274, 4294901760
        %517 = vmatmul.f32.gmra.mxu0 %v516
        %v518 = vpop.f32.mrf.mxu0
        %v519 = vadd.f32 %v398, %v518
        %v520 = vand.u32 %v277, 4294901760
        %521 = vmatmul.f32.gmra.mxu0 %v520
        %v522 = vpop.f32.mrf.mxu0
        %v523 = vadd.f32 %v406, %v522
        %v524 = vand.u32 %v280, 4294901760
        %525 = vmatmul.f32.gmra.mxu0 %v524
        %v526 = vpop.f32.mrf.mxu0
        %v527 = vadd.f32 %v414, %v526
        %v528 = vand.u32 %v283, 4294901760
        %529 = vmatmul.f32.gmra.mxu0 %v528
        %v530 = vpop.f32.mrf.mxu0
        %v531 = vadd.f32 %v422, %v530
        %v532 = vand.u32 %v286, 4294901760
        %533 = vmatmul.f32.gmra.mxu0 %v532
        %v534 = vpop.f32.mrf.mxu0
        %v535 = vadd.f32 %v430, %v534
        %v536 = vand.u32 %v289, 4294901760
        %537 = vmatmul.f32.gmra.mxu0 %v536
        %v538 = vpop.f32.mrf.mxu0
        %v539 = vadd.f32 %v438, %v538
        %540 = vdwg.mxu0
        %541 = vmatpush.msra.mxu0 0.0
        %542 = vmatpush.msra.mxu0 0.0
        %543 = vmatpush.msra.mxu0 0.0
        %544 = vmatpush.msra.mxu0 0.0
        %545 = vmatpush.msra.mxu0 0.0
        %546 = vmatpush.msra.mxu0 0.0
        %547 = vmatpush.msra.mxu0 0.0
        %548 = vmatpush.msra.mxu0 0.0
        %549 = vmatpush.msra.mxu0 0.0
        %550 = vmatpush.msra.mxu0 0.0
        %551 = vmatpush.msra.mxu0 0.0
        %552 = vmatpush.msra.mxu0 0.0
        %v553 = vand.u32 %v202, 4294901760
        %v554 = vsub.f32 %v202, %v553
        %555 = vmatpush.msra.mxu0 %v554
        %v556 = vand.u32 %v201, 4294901760
        %v557 = vsub.f32 %v201, %v556
        %558 = vmatpush.msra.mxu0 %v557
        %v559 = vand.u32 %v200, 4294901760
        %v560 = vsub.f32 %v200, %v559
        %561 = vmatpush.msra.mxu0 %v560
        %v562 = vand.u32 %v199, 4294901760
        %v563 = vsub.f32 %v199, %v562
        %564 = vmatpush.msra.mxu0 %v563
        %v565 = vand.u32 %v244, 4294901760
        %v566 = vsub.f32 %v244, %v565
        %567 = vmatmul.f32.gmra.mxu0 %v566
        %v568 = vpop.f32.mrf.mxu0
        %v569 = vadd.f32 %v479, %v568
        %v570 = vand.u32 %v247, 4294901760
        %v571 = vsub.f32 %v247, %v570
        %572 = vmatmul.f32.gmra.mxu0 %v571
        %v573 = vpop.f32.mrf.mxu0
        %v574 = vadd.f32 %v483, %v573
        %v575 = vand.u32 %v250, 4294901760
        %v576 = vsub.f32 %v250, %v575
        %577 = vmatmul.f32.gmra.mxu0 %v576
        %v578 = vpop.f32.mrf.mxu0
        %v579 = vadd.f32 %v487, %v578
        %v580 = vand.u32 %v253, 4294901760
        %v581 = vsub.f32 %v253, %v580
        %582 = vmatmul.f32.gmra.mxu0 %v581
        %v583 = vpop.f32.mrf.mxu0
        %v584 = vadd.f32 %v491, %v583
        %v585 = vand.u32 %v256, 4294901760
        %v586 = vsub.f32 %v256, %v585
        %587 = vmatmul.f32.gmra.mxu0 %v586
        %v588 = vpop.f32.mrf.mxu0
        %v589 = vadd.f32 %v495, %v588
        %v590 = vand.u32 %v259, 4294901760
        %v591 = vsub.f32 %v259, %v590
        %592 = vmatmul.f32.gmra.mxu0 %v591
        %v593 = vpop.f32.mrf.mxu0
        %v594 = vadd.f32 %v499, %v593
        %v595 = vand.u32 %v262, 4294901760
        %v596 = vsub.f32 %v262, %v595
        %597 = vmatmul.f32.gmra.mxu0 %v596
        %v598 = vpop.f32.mrf.mxu0
        %v599 = vadd.f32 %v503, %v598
        %v600 = vand.u32 %v265, 4294901760
        %v601 = vsub.f32 %v265, %v600
        %602 = vmatmul.f32.gmra.mxu0 %v601
        %v603 = vpop.f32.mrf.mxu0
        %v604 = vadd.f32 %v507, %v603
        %v605 = vand.u32 %v268, 4294901760
        %v606 = vsub.f32 %v268, %v605
        %607 = vmatmul.f32.gmra.mxu0 %v606
        %v608 = vpop.f32.mrf.mxu0
        %v609 = vadd.f32 %v511, %v608
        %v610 = vand.u32 %v271, 4294901760
        %v611 = vsub.f32 %v271, %v610
        %612 = vmatmul.f32.gmra.mxu0 %v611
        %v613 = vpop.f32.mrf.mxu0
        %v614 = vadd.f32 %v515, %v613
        %v615 = vand.u32 %v274, 4294901760
        %v616 = vsub.f32 %v274, %v615
        %617 = vmatmul.f32.gmra.mxu0 %v616
        %v618 = vpop.f32.mrf.mxu0
        %v619 = vadd.f32 %v519, %v618
        %v620 = vand.u32 %v277, 4294901760
        %v621 = vsub.f32 %v277, %v620
        %622 = vmatmul.f32.gmra.mxu0 %v621
        %v623 = vpop.f32.mrf.mxu0
        %v624 = vadd.f32 %v523, %v623
        %v625 = vand.u32 %v280, 4294901760
        %v626 = vsub.f32 %v280, %v625
        %627 = vmatmul.f32.gmra.mxu0 %v626
        %v628 = vpop.f32.mrf.mxu0
        %v629 = vadd.f32 %v527, %v628
        %v630 = vand.u32 %v283, 4294901760
        %v631 = vsub.f32 %v283, %v630
        %632 = vmatmul.f32.gmra.mxu0 %v631
        %v633 = vpop.f32.mrf.mxu0
        %v634 = vadd.f32 %v531, %v633
        %v635 = vand.u32 %v286, 4294901760
        %v636 = vsub.f32 %v286, %v635
        %637 = vmatmul.f32.gmra.mxu0 %v636
        %v638 = vpop.f32.mrf.mxu0
        %v639 = vadd.f32 %v535, %v638
        %v640 = vand.u32 %v289, 4294901760
        %v641 = vsub.f32 %v289, %v640
        %642 = vmatmul.f32.gmra.mxu0 %v641
        %v643 = vpop.f32.mrf.mxu0
        %v644 = vadd.f32 %v539, %v643
        %645 = vdwg.mxu0
        %646 = vmatpush.msra.mxu0 0.0
        %647 = vmatpush.msra.mxu0 0.0
        %648 = vmatpush.msra.mxu0 0.0
        %649 = vmatpush.msra.mxu0 0.0
        %650 = vmatpush.msra.mxu0 0.0
        %651 = vmatpush.msra.mxu0 0.0
        %652 = vmatpush.msra.mxu0 0.0
        %653 = vmatpush.msra.mxu0 0.0
        %654 = vmatpush.msra.mxu0 0.0
        %655 = vmatpush.msra.mxu0 0.0
        %656 = vmatpush.msra.mxu0 0.0
        %657 = vmatpush.msra.mxu0 0.0
        %v658 = vand.u32 %v202, 4294901760
        %659 = vmatpush.msra.mxu0 %v658
        %v660 = vand.u32 %v201, 4294901760
        %661 = vmatpush.msra.mxu0 %v660
        %v662 = vand.u32 %v200, 4294901760
        %663 = vmatpush.msra.mxu0 %v662
        %v664 = vand.u32 %v199, 4294901760
        %665 = vmatpush.msra.mxu0 %v664
        %v666 = vand.u32 %v244, 4294901760
        %v667 = vsub.f32 %v244, %v666
        %v668 = vand.u32 %v667, 4294901760
        %669 = vmatmul.f32.gmra.mxu0 %v668
        %v670 = vpop.f32.mrf.mxu0
        %v671 = vadd.f32 %v569, %v670
        %v672 = vand.u32 %v247, 4294901760
        %v673 = vsub.f32 %v247, %v672
        %v674 = vand.u32 %v673, 4294901760
        %675 = vmatmul.f32.gmra.mxu0 %v674
        %v676 = vpop.f32.mrf.mxu0
        %v677 = vadd.f32 %v574, %v676
        %v678 = vand.u32 %v250, 4294901760
        %v679 = vsub.f32 %v250, %v678
        %v680 = vand.u32 %v679, 4294901760
        %681 = vmatmul.f32.gmra.mxu0 %v680
        %v682 = vpop.f32.mrf.mxu0
        %v683 = vadd.f32 %v579, %v682
        %v684 = vand.u32 %v253, 4294901760
        %v685 = vsub.f32 %v253, %v684
        %v686 = vand.u32 %v685, 4294901760
        %687 = vmatmul.f32.gmra.mxu0 %v686
        %v688 = vpop.f32.mrf.mxu0
        %v689 = vadd.f32 %v584, %v688
        %v690 = vand.u32 %v256, 4294901760
        %v691 = vsub.f32 %v256, %v690
        %v692 = vand.u32 %v691, 4294901760
        %693 = vmatmul.f32.gmra.mxu0 %v692
        %v694 = vpop.f32.mrf.mxu0
        %v695 = vadd.f32 %v589, %v694
        %v696 = vand.u32 %v259, 4294901760
        %v697 = vsub.f32 %v259, %v696
        %v698 = vand.u32 %v697, 4294901760
        %699 = vmatmul.f32.gmra.mxu0 %v698
        %v700 = vpop.f32.mrf.mxu0
        %v701 = vadd.f32 %v594, %v700
        %v702 = vand.u32 %v262, 4294901760
        %v703 = vsub.f32 %v262, %v702
        %v704 = vand.u32 %v703, 4294901760
        %705 = vmatmul.f32.gmra.mxu0 %v704
        %v706 = vpop.f32.mrf.mxu0
        %v707 = vadd.f32 %v599, %v706
        %v708 = vand.u32 %v265, 4294901760
        %v709 = vsub.f32 %v265, %v708
        %v710 = vand.u32 %v709, 4294901760
        %711 = vmatmul.f32.gmra.mxu0 %v710
        %v712 = vpop.f32.mrf.mxu0
        %v713 = vadd.f32 %v604, %v712
        %v714 = vand.u32 %v268, 4294901760
        %v715 = vsub.f32 %v268, %v714
        %v716 = vand.u32 %v715, 4294901760
        %717 = vmatmul.f32.gmra.mxu0 %v716
        %v718 = vpop.f32.mrf.mxu0
        %v719 = vadd.f32 %v609, %v718
        %v720 = vand.u32 %v271, 4294901760
        %v721 = vsub.f32 %v271, %v720
        %v722 = vand.u32 %v721, 4294901760
        %723 = vmatmul.f32.gmra.mxu0 %v722
        %v724 = vpop.f32.mrf.mxu0
        %v725 = vadd.f32 %v614, %v724
        %v726 = vand.u32 %v274, 4294901760
        %v727 = vsub.f32 %v274, %v726
        %v728 = vand.u32 %v727, 4294901760
        %729 = vmatmul.f32.gmra.mxu0 %v728
        %v730 = vpop.f32.mrf.mxu0
        %v731 = vadd.f32 %v619, %v730
        %v732 = vand.u32 %v277, 4294901760
        %v733 = vsub.f32 %v277, %v732
        %v734 = vand.u32 %v733, 4294901760
        %735 = vmatmul.f32.gmra.mxu0 %v734
        %v736 = vpop.f32.mrf.mxu0
        %v737 = vadd.f32 %v624, %v736
        %v738 = vand.u32 %v280, 4294901760
        %v739 = vsub.f32 %v280, %v738
        %v740 = vand.u32 %v739, 4294901760
        %741 = vmatmul.f32.gmra.mxu0 %v740
        %v742 = vpop.f32.mrf.mxu0
        %v743 = vadd.f32 %v629, %v742
        %v744 = vand.u32 %v283, 4294901760
        %v745 = vsub.f32 %v283, %v744
        %v746 = vand.u32 %v745, 4294901760
        %747 = vmatmul.f32.gmra.mxu0 %v746
        %v748 = vpop.f32.mrf.mxu0
        %v749 = vadd.f32 %v634, %v748
        %v750 = vand.u32 %v286, 4294901760
        %v751 = vsub.f32 %v286, %v750
        %v752 = vand.u32 %v751, 4294901760
        %753 = vmatmul.f32.gmra.mxu0 %v752
        %v754 = vpop.f32.mrf.mxu0
        %v755 = vadd.f32 %v639, %v754
        %v756 = vand.u32 %v289, 4294901760
        %v757 = vsub.f32 %v289, %v756
        %v758 = vand.u32 %v757, 4294901760
        %759 = vmatmul.f32.gmra.mxu0 %v758
        %v760 = vpop.f32.mrf.mxu0
        %v761 = vadd.f32 %v644, %v760
        %762 = vdwg.mxu0
        %763 = vmatpush.msra.mxu0 0.0
        %764 = vmatpush.msra.mxu0 0.0
        %765 = vmatpush.msra.mxu0 0.0
        %766 = vmatpush.msra.mxu0 0.0
        %767 = vmatpush.msra.mxu0 0.0
        %768 = vmatpush.msra.mxu0 0.0
        %769 = vmatpush.msra.mxu0 0.0
        %770 = vmatpush.msra.mxu0 0.0
        %771 = vmatpush.msra.mxu0 0.0
        %772 = vmatpush.msra.mxu0 0.0
        %773 = vmatpush.msra.mxu0 0.0
        %774 = vmatpush.msra.mxu0 0.0
        %v775 = vand.u32 %v202, 4294901760
        %v776 = vsub.f32 %v202, %v775
        %v777 = vand.u32 %v776, 4294901760
        %778 = vmatpush.msra.mxu0 %v777
        %v779 = vand.u32 %v201, 4294901760
        %v780 = vsub.f32 %v201, %v779
        %v781 = vand.u32 %v780, 4294901760
        %782 = vmatpush.msra.mxu0 %v781
        %v783 = vand.u32 %v200, 4294901760
        %v784 = vsub.f32 %v200, %v783
        %v785 = vand.u32 %v784, 4294901760
        %786 = vmatpush.msra.mxu0 %v785
        %v787 = vand.u32 %v199, 4294901760
        %v788 = vsub.f32 %v199, %v787
        %v789 = vand.u32 %v788, 4294901760
        %790 = vmatpush.msra.mxu0 %v789
        %v791 = vand.u32 %v244, 4294901760
        %792 = vmatmul.f32.gmra.mxu0 %v791
        %v793 = vpop.f32.mrf.mxu0
        %v794 = vadd.f32 %v671, %v793
        %v795 = vand.u32 %v247, 4294901760
        %796 = vmatmul.f32.gmra.mxu0 %v795
        %v797 = vpop.f32.mrf.mxu0
        %v798 = vadd.f32 %v677, %v797
        %v799 = vand.u32 %v250, 4294901760
        %800 = vmatmul.f32.gmra.mxu0 %v799
        %v801 = vpop.f32.mrf.mxu0
        %v802 = vadd.f32 %v683, %v801
        %v803 = vand.u32 %v253, 4294901760
        %804 = vmatmul.f32.gmra.mxu0 %v803
        %v805 = vpop.f32.mrf.mxu0
        %v806 = vadd.f32 %v689, %v805
        %v807 = vand.u32 %v256, 4294901760
        %808 = vmatmul.f32.gmra.mxu0 %v807
        %v809 = vpop.f32.mrf.mxu0
        %v810 = vadd.f32 %v695, %v809
        %v811 = vand.u32 %v259, 4294901760
        %812 = vmatmul.f32.gmra.mxu0 %v811
        %v813 = vpop.f32.mrf.mxu0
        %v814 = vadd.f32 %v701, %v813
        %v815 = vand.u32 %v262, 4294901760
        %816 = vmatmul.f32.gmra.mxu0 %v815
        %v817 = vpop.f32.mrf.mxu0
        %v818 = vadd.f32 %v707, %v817
        %v819 = vand.u32 %v265, 4294901760
        %820 = vmatmul.f32.gmra.mxu0 %v819
        %v821 = vpop.f32.mrf.mxu0
        %v822 = vadd.f32 %v713, %v821
        %v823 = vand.u32 %v268, 4294901760
        %824 = vmatmul.f32.gmra.mxu0 %v823
        %v825 = vpop.f32.mrf.mxu0
        %v826 = vadd.f32 %v719, %v825
        %v827 = vand.u32 %v271, 4294901760
        %828 = vmatmul.f32.gmra.mxu0 %v827
        %v829 = vpop.f32.mrf.mxu0
        %v830 = vadd.f32 %v725, %v829
        %v831 = vand.u32 %v274, 4294901760
        %832 = vmatmul.f32.gmra.mxu0 %v831
        %v833 = vpop.f32.mrf.mxu0
        %v834 = vadd.f32 %v731, %v833
        %v835 = vand.u32 %v277, 4294901760
        %836 = vmatmul.f32.gmra.mxu0 %v835
        %v837 = vpop.f32.mrf.mxu0
        %v838 = vadd.f32 %v737, %v837
        %v839 = vand.u32 %v280, 4294901760
        %840 = vmatmul.f32.gmra.mxu0 %v839
        %v841 = vpop.f32.mrf.mxu0
        %v842 = vadd.f32 %v743, %v841
        %v843 = vand.u32 %v283, 4294901760
        %844 = vmatmul.f32.gmra.mxu0 %v843
        %v845 = vpop.f32.mrf.mxu0
        %v846 = vadd.f32 %v749, %v845
        %v847 = vand.u32 %v286, 4294901760
        %848 = vmatmul.f32.gmra.mxu0 %v847
        %v849 = vpop.f32.mrf.mxu0
        %v850 = vadd.f32 %v755, %v849
        %v851 = vand.u32 %v289, 4294901760
        %852 = vmatmul.f32.gmra.mxu0 %v851
        %v853 = vpop.f32.mrf.mxu0
        %v854 = vadd.f32 %v761, %v853
        %855 = vdwg.mxu0
        %856 = vmatpush.msra.mxu0 0.0
        %857 = vmatpush.msra.mxu0 0.0
        %858 = vmatpush.msra.mxu0 0.0
        %859 = vmatpush.msra.mxu0 0.0
        %860 = vmatpush.msra.mxu0 0.0
        %861 = vmatpush.msra.mxu0 0.0
        %862 = vmatpush.msra.mxu0 0.0
        %863 = vmatpush.msra.mxu0 0.0
        %864 = vmatpush.msra.mxu0 0.0
        %865 = vmatpush.msra.mxu0 0.0
        %866 = vmatpush.msra.mxu0 0.0
        %867 = vmatpush.msra.mxu0 0.0
        %v868 = vand.u32 %v202, 4294901760
        %869 = vmatpush.msra.mxu0 %v868
        %v870 = vand.u32 %v201, 4294901760
        %871 = vmatpush.msra.mxu0 %v870
        %v872 = vand.u32 %v200, 4294901760
        %873 = vmatpush.msra.mxu0 %v872
        %v874 = vand.u32 %v199, 4294901760
        %875 = vmatpush.msra.mxu0 %v874
        %v876 = vand.u32 %v244, 4294901760
        %877 = vmatmul.f32.gmra.mxu0 %v876
        %v878 = vpop.f32.mrf.mxu0
        %v879 = vadd.f32 %v794, %v878
        %v880 = vand.u32 %v247, 4294901760
        %881 = vmatmul.f32.gmra.mxu0 %v880
        %v882 = vpop.f32.mrf.mxu0
        %v883 = vadd.f32 %v798, %v882
        %v884 = vand.u32 %v250, 4294901760
        %885 = vmatmul.f32.gmra.mxu0 %v884
        %v886 = vpop.f32.mrf.mxu0
        %v887 = vadd.f32 %v802, %v886
        %v888 = vand.u32 %v253, 4294901760
        %889 = vmatmul.f32.gmra.mxu0 %v888
        %v890 = vpop.f32.mrf.mxu0
        %v891 = vadd.f32 %v806, %v890
        %v892 = vand.u32 %v256, 4294901760
        %893 = vmatmul.f32.gmra.mxu0 %v892
        %v894 = vpop.f32.mrf.mxu0
        %v895 = vadd.f32 %v810, %v894
        %v896 = vand.u32 %v259, 4294901760
        %897 = vmatmul.f32.gmra.mxu0 %v896
        %v898 = vpop.f32.mrf.mxu0
        %v899 = vadd.f32 %v814, %v898
        %v900 = vand.u32 %v262, 4294901760
        %901 = vmatmul.f32.gmra.mxu0 %v900
        %v902 = vpop.f32.mrf.mxu0
        %v903 = vadd.f32 %v818, %v902
        %v904 = vand.u32 %v265, 4294901760
        %905 = vmatmul.f32.gmra.mxu0 %v904
        %v906 = vpop.f32.mrf.mxu0
        %v907 = vadd.f32 %v822, %v906
        %v908 = vand.u32 %v268, 4294901760
        %909 = vmatmul.f32.gmra.mxu0 %v908
        %v910 = vpop.f32.mrf.mxu0
        %v911 = vadd.f32 %v826, %v910
        %v912 = vand.u32 %v271, 4294901760
        %913 = vmatmul.f32.gmra.mxu0 %v912
        %v914 = vpop.f32.mrf.mxu0
        %v915 = vadd.f32 %v830, %v914
        %v916 = vand.u32 %v274, 4294901760
        %917 = vmatmul.f32.gmra.mxu0 %v916
        %v918 = vpop.f32.mrf.mxu0
        %v919 = vadd.f32 %v834, %v918
        %v920 = vand.u32 %v277, 4294901760
        %921 = vmatmul.f32.gmra.mxu0 %v920
        %v922 = vpop.f32.mrf.mxu0
        %v923 = vadd.f32 %v838, %v922
        %v924 = vand.u32 %v280, 4294901760
        %925 = vmatmul.f32.gmra.mxu0 %v924
        %v926 = vpop.f32.mrf.mxu0
        %v927 = vadd.f32 %v842, %v926
        %v928 = vand.u32 %v283, 4294901760
        %929 = vmatmul.f32.gmra.mxu0 %v928
        %v930 = vpop.f32.mrf.mxu0
        %v931 = vadd.f32 %v846, %v930
        %v932 = vand.u32 %v286, 4294901760
        %933 = vmatmul.f32.gmra.mxu0 %v932
        %v934 = vpop.f32.mrf.mxu0
        %v935 = vadd.f32 %v850, %v934
        %v936 = vand.u32 %v289, 4294901760
        %937 = vmatmul.f32.gmra.mxu0 %v936
        %v938 = vpop.f32.mrf.mxu0
        %v939 = vadd.f32 %v854, %v938
        %940 = vdwg.mxu0
        %v941 = vlaneseq
        %v942 = vand.u32 %v941, 127
        %vm943 = vcmp.lt.s32.totalorder %v942, 8
        %v944 = vsel %vm943, -1e+08, -3e+38
        %v945 = vstv %s198
        %vm946 = vcmp.lt.s32.totalorder %v942, %v945
        %v947 = vsel %vm946, 1, 0
        %vm948 = vcmp.eq.s32.totalorder %v947, 1
        %v949 = vsel %vm948, %v879, %v944
        %v950 = vsel %vm948, %v883, %v944
        %v951 = vsel %vm948, %v887, %v944
        %v952 = vsel %vm948, %v891, %v944
        %v953 = vsel %vm948, %v895, %v944
        %v954 = vsel %vm948, %v899, %v944
        %v955 = vsel %vm948, %v903, %v944
        %v956 = vsel %vm948, %v907, %v944
        %v957 = vsel %vm948, %v911, %v944
        %v958 = vsel %vm948, %v915, %v944
        %v959 = vsel %vm948, %v919, %v944
        %v960 = vsel %vm948, %v923, %v944
        %v961 = vsel %vm948, %v927, %v944
        %v962 = vsel %vm948, %v931, %v944
        %v963 = vsel %vm948, %v935, %v944
        %v964 = vsel %vm948, %v939, %v944
        %965 = vmax.xlane.f32.xlu0 %v949
        %v966 = vpop.xlane.xlu0 %965
        %967 = vmax.xlane.f32.xlu0 %v950
        %v968 = vpop.xlane.xlu0 %967
        %969 = vmax.xlane.f32.xlu0 %v951
        %v970 = vpop.xlane.xlu0 %969
        %971 = vmax.xlane.f32.xlu0 %v952
        %v972 = vpop.xlane.xlu0 %971
        %973 = vmax.xlane.f32.xlu0 %v953
        %v974 = vpop.xlane.xlu0 %973
        %975 = vmax.xlane.f32.xlu0 %v954
        %v976 = vpop.xlane.xlu0 %975
        %977 = vmax.xlane.f32.xlu0 %v955
        %v978 = vpop.xlane.xlu0 %977
        %979 = vmax.xlane.f32.xlu0 %v956
        %v980 = vpop.xlane.xlu0 %979
        %981 = vmax.xlane.f32.xlu0 %v957
        %v982 = vpop.xlane.xlu0 %981
        %983 = vmax.xlane.f32.xlu0 %v958
        %v984 = vpop.xlane.xlu0 %983
        %985 = vmax.xlane.f32.xlu0 %v959
        %v986 = vpop.xlane.xlu0 %985
        %987 = vmax.xlane.f32.xlu0 %v960
        %v988 = vpop.xlane.xlu0 %987
        %989 = vmax.xlane.f32.xlu0 %v961
        %v990 = vpop.xlane.xlu0 %989
        %991 = vmax.xlane.f32.xlu0 %v962
        %v992 = vpop.xlane.xlu0 %991
        %993 = vmax.xlane.f32.xlu0 %v963
        %v994 = vpop.xlane.xlu0 %993
        %995 = vmax.xlane.f32.xlu0 %v964
        %v996 = vpop.xlane.xlu0 %995
        %v997 = vsub.f32 %v949, %v966
        %v998 = vsub.f32 %v950, %v968
        %v999 = vsub.f32 %v951, %v970
        %v1000 = vsub.f32 %v952, %v972
        %v1001 = vsub.f32 %v953, %v974
        %v1002 = vsub.f32 %v954, %v976
        %v1003 = vsub.f32 %v955, %v978
        %v1004 = vsub.f32 %v956, %v980
        %v1005 = vsub.f32 %v957, %v982
        %v1006 = vsub.f32 %v958, %v984
        %v1007 = vsub.f32 %v959, %v986
        %v1008 = vsub.f32 %v960, %v988
        %v1009 = vsub.f32 %v961, %v990
        %v1010 = vsub.f32 %v962, %v992
        %v1011 = vsub.f32 %v963, %v994
        %v1012 = vsub.f32 %v964, %v996
        %v1013 = vmul.f32 %v997, 1.442695
        %v1014 = vpow.pop %v1013
        %v1015 = vmul.f32 %v998, 1.442695
        %v1016 = vpow.pop %v1015
        %v1017 = vmul.f32 %v999, 1.442695
        %v1018 = vpow.pop %v1017
        %v1019 = vmul.f32 %v1000, 1.442695
        %v1020 = vpow.pop %v1019
        %v1021 = vmul.f32 %v1001, 1.442695
        %v1022 = vpow.pop %v1021
        %v1023 = vmul.f32 %v1002, 1.442695
        %v1024 = vpow.pop %v1023
        %v1025 = vmul.f32 %v1003, 1.442695
        %v1026 = vpow.pop %v1025
        %v1027 = vmul.f32 %v1004, 1.442695
        %v1028 = vpow.pop %v1027
        %v1029 = vmul.f32 %v1005, 1.442695
        %v1030 = vpow.pop %v1029
        %v1031 = vmul.f32 %v1006, 1.442695
        %v1032 = vpow.pop %v1031
        %v1033 = vmul.f32 %v1007, 1.442695
        %v1034 = vpow.pop %v1033
        %v1035 = vmul.f32 %v1008, 1.442695
        %v1036 = vpow.pop %v1035
        %v1037 = vmul.f32 %v1009, 1.442695
        %v1038 = vpow.pop %v1037
        %v1039 = vmul.f32 %v1010, 1.442695
        %v1040 = vpow.pop %v1039
        %v1041 = vmul.f32 %v1011, 1.442695
        %v1042 = vpow.pop %v1041
        %v1043 = vmul.f32 %v1012, 1.442695
        %v1044 = vpow.pop %v1043
        %1045 = vadd.xlane.f32.xlu0 %v1014
        %v1046 = vpop.xlane.xlu0 %1045
        %1047 = vadd.xlane.f32.xlu0 %v1016
        %v1048 = vpop.xlane.xlu0 %1047
        %1049 = vadd.xlane.f32.xlu0 %v1018
        %v1050 = vpop.xlane.xlu0 %1049
        %1051 = vadd.xlane.f32.xlu0 %v1020
        %v1052 = vpop.xlane.xlu0 %1051
        %1053 = vadd.xlane.f32.xlu0 %v1022
        %v1054 = vpop.xlane.xlu0 %1053
        %1055 = vadd.xlane.f32.xlu0 %v1024
        %v1056 = vpop.xlane.xlu0 %1055
        %1057 = vadd.xlane.f32.xlu0 %v1026
        %v1058 = vpop.xlane.xlu0 %1057
        %1059 = vadd.xlane.f32.xlu0 %v1028
        %v1060 = vpop.xlane.xlu0 %1059
        %1061 = vadd.xlane.f32.xlu0 %v1030
        %v1062 = vpop.xlane.xlu0 %1061
        %1063 = vadd.xlane.f32.xlu0 %v1032
        %v1064 = vpop.xlane.xlu0 %1063
        %1065 = vadd.xlane.f32.xlu0 %v1034
        %v1066 = vpop.xlane.xlu0 %1065
        %1067 = vadd.xlane.f32.xlu0 %v1036
        %v1068 = vpop.xlane.xlu0 %1067
        %1069 = vadd.xlane.f32.xlu0 %v1038
        %v1070 = vpop.xlane.xlu0 %1069
        %1071 = vadd.xlane.f32.xlu0 %v1040
        %v1072 = vpop.xlane.xlu0 %1071
        %1073 = vadd.xlane.f32.xlu0 %v1042
        %v1074 = vpop.xlane.xlu0 %1073
        %1075 = vadd.xlane.f32.xlu0 %v1044
        %v1076 = vpop.xlane.xlu0 %1075
        %v1077 = vrcp.pop %v1046
        %v1078 = vmul.f32 %v1046, %v1077
        %v1079 = vsub.f32 1.0, %v1078
        %v1080 = vmul.f32 %v1077, %v1079
        %v1081 = vadd.f32 %v1077, %v1080
        %vm1082 = vweird.f32 %v1046
        %vm1083 = vweird.f32 %v1077
        %vm1084 = vmor %vm1082, %vm1083
        %v1085 = vsel %vm1084, %v1077, %v1081
        %v1086 = vand.u32 2147483647, %v1046
        %vm1087 = vcmp.eq.f32.partialorder %v1086, 8.507059e+37
        %v1088 = vand.u32 %v1046, 2147483648
        %v1089 = vor.u32 1.1754944e-38, %v1088
        %v1090 = vsel %vm1087, %v1089, %v1085
        %v1091 = vrcp.pop %v1048
        %v1092 = vmul.f32 %v1048, %v1091
        %v1093 = vsub.f32 1.0, %v1092
        %v1094 = vmul.f32 %v1091, %v1093
        %v1095 = vadd.f32 %v1091, %v1094
        %vm1096 = vweird.f32 %v1048
        %vm1097 = vweird.f32 %v1091
        %vm1098 = vmor %vm1096, %vm1097
        %v1099 = vsel %vm1098, %v1091, %v1095
        %v1100 = vand.u32 2147483647, %v1048
        %vm1101 = vcmp.eq.f32.partialorder %v1100, 8.507059e+37
        %v1102 = vand.u32 %v1048, 2147483648
        %v1103 = vor.u32 1.1754944e-38, %v1102
        %v1104 = vsel %vm1101, %v1103, %v1099
        %v1105 = vrcp.pop %v1050
        %v1106 = vmul.f32 %v1050, %v1105
        %v1107 = vsub.f32 1.0, %v1106
        %v1108 = vmul.f32 %v1105, %v1107
        %v1109 = vadd.f32 %v1105, %v1108
        %vm1110 = vweird.f32 %v1050
        %vm1111 = vweird.f32 %v1105
        %vm1112 = vmor %vm1110, %vm1111
        %v1113 = vsel %vm1112, %v1105, %v1109
        %v1114 = vand.u32 2147483647, %v1050
        %vm1115 = vcmp.eq.f32.partialorder %v1114, 8.507059e+37
        %v1116 = vand.u32 %v1050, 2147483648
        %v1117 = vor.u32 1.1754944e-38, %v1116
        %v1118 = vsel %vm1115, %v1117, %v1113
        %v1119 = vrcp.pop %v1052
        %v1120 = vmul.f32 %v1052, %v1119
        %v1121 = vsub.f32 1.0, %v1120
        %v1122 = vmul.f32 %v1119, %v1121
        %v1123 = vadd.f32 %v1119, %v1122
        %vm1124 = vweird.f32 %v1052
        %vm1125 = vweird.f32 %v1119
        %vm1126 = vmor %vm1124, %vm1125
        %v1127 = vsel %vm1126, %v1119, %v1123
        %v1128 = vand.u32 2147483647, %v1052
        %vm1129 = vcmp.eq.f32.partialorder %v1128, 8.507059e+37
        %v1130 = vand.u32 %v1052, 2147483648
        %v1131 = vor.u32 1.1754944e-38, %v1130
        %v1132 = vsel %vm1129, %v1131, %v1127
        %v1133 = vrcp.pop %v1054
        %v1134 = vmul.f32 %v1054, %v1133
        %v1135 = vsub.f32 1.0, %v1134
        %v1136 = vmul.f32 %v1133, %v1135
        %v1137 = vadd.f32 %v1133, %v1136
        %vm1138 = vweird.f32 %v1054
        %vm1139 = vweird.f32 %v1133
        %vm1140 = vmor %vm1138, %vm1139
        %v1141 = vsel %vm1140, %v1133, %v1137
        %v1142 = vand.u32 2147483647, %v1054
        %vm1143 = vcmp.eq.f32.partialorder %v1142, 8.507059e+37
        %v1144 = vand.u32 %v1054, 2147483648
        %v1145 = vor.u32 1.1754944e-38, %v1144
        %v1146 = vsel %vm1143, %v1145, %v1141
        %v1147 = vrcp.pop %v1056
        %v1148 = vmul.f32 %v1056, %v1147
        %v1149 = vsub.f32 1.0, %v1148
        %v1150 = vmul.f32 %v1147, %v1149
        %v1151 = vadd.f32 %v1147, %v1150
        %vm1152 = vweird.f32 %v1056
        %vm1153 = vweird.f32 %v1147
        %vm1154 = vmor %vm1152, %vm1153
        %v1155 = vsel %vm1154, %v1147, %v1151
        %v1156 = vand.u32 2147483647, %v1056
        %vm1157 = vcmp.eq.f32.partialorder %v1156, 8.507059e+37
        %v1158 = vand.u32 %v1056, 2147483648
        %v1159 = vor.u32 1.1754944e-38, %v1158
        %v1160 = vsel %vm1157, %v1159, %v1155
        %v1161 = vrcp.pop %v1058
        %v1162 = vmul.f32 %v1058, %v1161
        %v1163 = vsub.f32 1.0, %v1162
        %v1164 = vmul.f32 %v1161, %v1163
        %v1165 = vadd.f32 %v1161, %v1164
        %vm1166 = vweird.f32 %v1058
        %vm1167 = vweird.f32 %v1161
        %vm1168 = vmor %vm1166, %vm1167
        %v1169 = vsel %vm1168, %v1161, %v1165
        %v1170 = vand.u32 2147483647, %v1058
        %vm1171 = vcmp.eq.f32.partialorder %v1170, 8.507059e+37
        %v1172 = vand.u32 %v1058, 2147483648
        %v1173 = vor.u32 1.1754944e-38, %v1172
        %v1174 = vsel %vm1171, %v1173, %v1169
        %v1175 = vrcp.pop %v1060
        %v1176 = vmul.f32 %v1060, %v1175
        %v1177 = vsub.f32 1.0, %v1176
        %v1178 = vmul.f32 %v1175, %v1177
        %v1179 = vadd.f32 %v1175, %v1178
        %vm1180 = vweird.f32 %v1060
        %vm1181 = vweird.f32 %v1175
        %vm1182 = vmor %vm1180, %vm1181
        %v1183 = vsel %vm1182, %v1175, %v1179
        %v1184 = vand.u32 2147483647, %v1060
        %vm1185 = vcmp.eq.f32.partialorder %v1184, 8.507059e+37
        %v1186 = vand.u32 %v1060, 2147483648
        %v1187 = vor.u32 1.1754944e-38, %v1186
        %v1188 = vsel %vm1185, %v1187, %v1183
        %v1189 = vrcp.pop %v1062
        %v1190 = vmul.f32 %v1062, %v1189
        %v1191 = vsub.f32 1.0, %v1190
        %v1192 = vmul.f32 %v1189, %v1191
        %v1193 = vadd.f32 %v1189, %v1192
        %vm1194 = vweird.f32 %v1062
        %vm1195 = vweird.f32 %v1189
        %vm1196 = vmor %vm1194, %vm1195
        %v1197 = vsel %vm1196, %v1189, %v1193
        %v1198 = vand.u32 2147483647, %v1062
        %vm1199 = vcmp.eq.f32.partialorder %v1198, 8.507059e+37
        %v1200 = vand.u32 %v1062, 2147483648
        %v1201 = vor.u32 1.1754944e-38, %v1200
        %v1202 = vsel %vm1199, %v1201, %v1197
        %v1203 = vrcp.pop %v1064
        %v1204 = vmul.f32 %v1064, %v1203
        %v1205 = vsub.f32 1.0, %v1204
        %v1206 = vmul.f32 %v1203, %v1205
        %v1207 = vadd.f32 %v1203, %v1206
        %vm1208 = vweird.f32 %v1064
        %vm1209 = vweird.f32 %v1203
        %vm1210 = vmor %vm1208, %vm1209
        %v1211 = vsel %vm1210, %v1203, %v1207
        %v1212 = vand.u32 2147483647, %v1064
        %vm1213 = vcmp.eq.f32.partialorder %v1212, 8.507059e+37
        %v1214 = vand.u32 %v1064, 2147483648
        %v1215 = vor.u32 1.1754944e-38, %v1214
        %v1216 = vsel %vm1213, %v1215, %v1211
        %v1217 = vrcp.pop %v1066
        %v1218 = vmul.f32 %v1066, %v1217
        %v1219 = vsub.f32 1.0, %v1218
        %v1220 = vmul.f32 %v1217, %v1219
        %v1221 = vadd.f32 %v1217, %v1220
        %vm1222 = vweird.f32 %v1066
        %vm1223 = vweird.f32 %v1217
        %vm1224 = vmor %vm1222, %vm1223
        %v1225 = vsel %vm1224, %v1217, %v1221
        %v1226 = vand.u32 2147483647, %v1066
        %vm1227 = vcmp.eq.f32.partialorder %v1226, 8.507059e+37
        %v1228 = vand.u32 %v1066, 2147483648
        %v1229 = vor.u32 1.1754944e-38, %v1228
        %v1230 = vsel %vm1227, %v1229, %v1225
        %v1231 = vrcp.pop %v1068
        %v1232 = vmul.f32 %v1068, %v1231
        %v1233 = vsub.f32 1.0, %v1232
        %v1234 = vmul.f32 %v1231, %v1233
        %v1235 = vadd.f32 %v1231, %v1234
        %vm1236 = vweird.f32 %v1068
        %vm1237 = vweird.f32 %v1231
        %vm1238 = vmor %vm1236, %vm1237
        %v1239 = vsel %vm1238, %v1231, %v1235
        %v1240 = vand.u32 2147483647, %v1068
        %vm1241 = vcmp.eq.f32.partialorder %v1240, 8.507059e+37
        %v1242 = vand.u32 %v1068, 2147483648
        %v1243 = vor.u32 1.1754944e-38, %v1242
        %v1244 = vsel %vm1241, %v1243, %v1239
        %v1245 = vrcp.pop %v1070
        %v1246 = vmul.f32 %v1070, %v1245
        %v1247 = vsub.f32 1.0, %v1246
        %v1248 = vmul.f32 %v1245, %v1247
        %v1249 = vadd.f32 %v1245, %v1248
        %vm1250 = vweird.f32 %v1070
        %vm1251 = vweird.f32 %v1245
        %vm1252 = vmor %vm1250, %vm1251
        %v1253 = vsel %vm1252, %v1245, %v1249
        %v1254 = vand.u32 2147483647, %v1070
        %vm1255 = vcmp.eq.f32.partialorder %v1254, 8.507059e+37
        %v1256 = vand.u32 %v1070, 2147483648
        %v1257 = vor.u32 1.1754944e-38, %v1256
        %v1258 = vsel %vm1255, %v1257, %v1253
        %v1259 = vrcp.pop %v1072
        %v1260 = vmul.f32 %v1072, %v1259
        %v1261 = vsub.f32 1.0, %v1260
        %v1262 = vmul.f32 %v1259, %v1261
        %v1263 = vadd.f32 %v1259, %v1262
        %vm1264 = vweird.f32 %v1072
        %vm1265 = vweird.f32 %v1259
        %vm1266 = vmor %vm1264, %vm1265
        %v1267 = vsel %vm1266, %v1259, %v1263
        %v1268 = vand.u32 2147483647, %v1072
        %vm1269 = vcmp.eq.f32.partialorder %v1268, 8.507059e+37
        %v1270 = vand.u32 %v1072, 2147483648
        %v1271 = vor.u32 1.1754944e-38, %v1270
        %v1272 = vsel %vm1269, %v1271, %v1267
        %v1273 = vrcp.pop %v1074
        %v1274 = vmul.f32 %v1074, %v1273
        %v1275 = vsub.f32 1.0, %v1274
        %v1276 = vmul.f32 %v1273, %v1275
        %v1277 = vadd.f32 %v1273, %v1276
        %vm1278 = vweird.f32 %v1074
        %vm1279 = vweird.f32 %v1273
        %vm1280 = vmor %vm1278, %vm1279
        %v1281 = vsel %vm1280, %v1273, %v1277
        %v1282 = vand.u32 2147483647, %v1074
        %vm1283 = vcmp.eq.f32.partialorder %v1282, 8.507059e+37
        %v1284 = vand.u32 %v1074, 2147483648
        %v1285 = vor.u32 1.1754944e-38, %v1284
        %v1286 = vsel %vm1283, %v1285, %v1281
        %v1287 = vrcp.pop %v1076
        %v1288 = vmul.f32 %v1076, %v1287
        %v1289 = vsub.f32 1.0, %v1288
        %v1290 = vmul.f32 %v1287, %v1289
        %v1291 = vadd.f32 %v1287, %v1290
        %vm1292 = vweird.f32 %v1076
        %vm1293 = vweird.f32 %v1287
        %vm1294 = vmor %vm1292, %vm1293
        %v1295 = vsel %vm1294, %v1287, %v1291
        %v1296 = vand.u32 2147483647, %v1076
        %vm1297 = vcmp.eq.f32.partialorder %v1296, 8.507059e+37
        %v1298 = vand.u32 %v1076, 2147483648
        %v1299 = vor.u32 1.1754944e-38, %v1298
        %v1300 = vsel %vm1297, %v1299, %v1295
        %1301 = vmatpush.xpose.msra.mxu0 0.0
        %1302 = vmatpush.xpose.msra.mxu0 0.0
        %1303 = vmatpush.xpose.msra.mxu0 0.0
        %1304 = vmatpush.xpose.msra.mxu0 0.0
        %1305 = vmatpush.xpose.msra.mxu0 0.0
        %1306 = vmatpush.xpose.msra.mxu0 0.0
        %1307 = vmatpush.xpose.msra.mxu0 0.0
        %1308 = vmatpush.xpose.msra.mxu0 0.0
        %1309 = vmatpush.xpose.msra.mxu0 0.0
        %1310 = vmatpush.xpose.msra.mxu0 0.0
        %1311 = vmatpush.xpose.msra.mxu0 0.0
        %1312 = vmatpush.xpose.msra.mxu0 0.0
        %v1313 = vand.u32 %v202, 4294901760
        %1314 = vmatpush.xpose.msra.mxu0 %v1313
        %v1315 = vand.u32 %v201, 4294901760
        %1316 = vmatpush.xpose.msra.mxu0 %v1315
        %v1317 = vand.u32 %v200, 4294901760
        %1318 = vmatpush.xpose.msra.mxu0 %v1317
        %v1319 = vand.u32 %v199, 4294901760
        %1320 = vmatpush.xpose.msra.mxu0 %v1319
        %v1321 = vand.u32 %v1014, 4294901760
        %v1322 = vsub.f32 %v1014, %v1321
        %v1323 = vand.u32 %v1322, 4294901760
        %v1324 = vsub.f32 %v1322, %v1323
        %v1325 = vand.u32 %v1324, 4294901760
        %1326 = vmatmul.f32.gmra.mxu0 %v1325
        %v1327 = vpop.f32.mrf.mxu0
        %v1328 = vadd.f32 0.0, %v1327
        %v1329 = vand.u32 %v1016, 4294901760
        %v1330 = vsub.f32 %v1016, %v1329
        %v1331 = vand.u32 %v1330, 4294901760
        %v1332 = vsub.f32 %v1330, %v1331
        %v1333 = vand.u32 %v1332, 4294901760
        %1334 = vmatmul.f32.gmra.mxu0 %v1333
        %v1335 = vpop.f32.mrf.mxu0
        %v1336 = vadd.f32 0.0, %v1335
        %v1337 = vand.u32 %v1018, 4294901760
        %v1338 = vsub.f32 %v1018, %v1337
        %v1339 = vand.u32 %v1338, 4294901760
        %v1340 = vsub.f32 %v1338, %v1339
        %v1341 = vand.u32 %v1340, 4294901760
        %1342 = vmatmul.f32.gmra.mxu0 %v1341
        %v1343 = vpop.f32.mrf.mxu0
        %v1344 = vadd.f32 0.0, %v1343
        %v1345 = vand.u32 %v1020, 4294901760
        %v1346 = vsub.f32 %v1020, %v1345
        %v1347 = vand.u32 %v1346, 4294901760
        %v1348 = vsub.f32 %v1346, %v1347
        %v1349 = vand.u32 %v1348, 4294901760
        %1350 = vmatmul.f32.gmra.mxu0 %v1349
        %v1351 = vpop.f32.mrf.mxu0
        %v1352 = vadd.f32 0.0, %v1351
        %v1353 = vand.u32 %v1022, 4294901760
        %v1354 = vsub.f32 %v1022, %v1353
        %v1355 = vand.u32 %v1354, 4294901760
        %v1356 = vsub.f32 %v1354, %v1355
        %v1357 = vand.u32 %v1356, 4294901760
        %1358 = vmatmul.f32.gmra.mxu0 %v1357
        %v1359 = vpop.f32.mrf.mxu0
        %v1360 = vadd.f32 0.0, %v1359
        %v1361 = vand.u32 %v1024, 4294901760
        %v1362 = vsub.f32 %v1024, %v1361
        %v1363 = vand.u32 %v1362, 4294901760
        %v1364 = vsub.f32 %v1362, %v1363
        %v1365 = vand.u32 %v1364, 4294901760
        %1366 = vmatmul.f32.gmra.mxu0 %v1365
        %v1367 = vpop.f32.mrf.mxu0
        %v1368 = vadd.f32 0.0, %v1367
        %v1369 = vand.u32 %v1026, 4294901760
        %v1370 = vsub.f32 %v1026, %v1369
        %v1371 = vand.u32 %v1370, 4294901760
        %v1372 = vsub.f32 %v1370, %v1371
        %v1373 = vand.u32 %v1372, 4294901760
        %1374 = vmatmul.f32.gmra.mxu0 %v1373
        %v1375 = vpop.f32.mrf.mxu0
        %v1376 = vadd.f32 0.0, %v1375
        %v1377 = vand.u32 %v1028, 4294901760
        %v1378 = vsub.f32 %v1028, %v1377
        %v1379 = vand.u32 %v1378, 4294901760
        %v1380 = vsub.f32 %v1378, %v1379
        %v1381 = vand.u32 %v1380, 4294901760
        %1382 = vmatmul.f32.gmra.mxu0 %v1381
        %v1383 = vpop.f32.mrf.mxu0
        %v1384 = vadd.f32 0.0, %v1383
        %v1385 = vand.u32 %v1030, 4294901760
        %v1386 = vsub.f32 %v1030, %v1385
        %v1387 = vand.u32 %v1386, 4294901760
        %v1388 = vsub.f32 %v1386, %v1387
        %v1389 = vand.u32 %v1388, 4294901760
        %1390 = vmatmul.f32.gmra.mxu0 %v1389
        %v1391 = vpop.f32.mrf.mxu0
        %v1392 = vadd.f32 0.0, %v1391
        %v1393 = vand.u32 %v1032, 4294901760
        %v1394 = vsub.f32 %v1032, %v1393
        %v1395 = vand.u32 %v1394, 4294901760
        %v1396 = vsub.f32 %v1394, %v1395
        %v1397 = vand.u32 %v1396, 4294901760
        %1398 = vmatmul.f32.gmra.mxu0 %v1397
        %v1399 = vpop.f32.mrf.mxu0
        %v1400 = vadd.f32 0.0, %v1399
        %v1401 = vand.u32 %v1034, 4294901760
        %v1402 = vsub.f32 %v1034, %v1401
        %v1403 = vand.u32 %v1402, 4294901760
        %v1404 = vsub.f32 %v1402, %v1403
        %v1405 = vand.u32 %v1404, 4294901760
        %1406 = vmatmul.f32.gmra.mxu0 %v1405
        %v1407 = vpop.f32.mrf.mxu0
        %v1408 = vadd.f32 0.0, %v1407
        %v1409 = vand.u32 %v1036, 4294901760
        %v1410 = vsub.f32 %v1036, %v1409
        %v1411 = vand.u32 %v1410, 4294901760
        %v1412 = vsub.f32 %v1410, %v1411
        %v1413 = vand.u32 %v1412, 4294901760
        %1414 = vmatmul.f32.gmra.mxu0 %v1413
        %v1415 = vpop.f32.mrf.mxu0
        %v1416 = vadd.f32 0.0, %v1415
        %v1417 = vand.u32 %v1038, 4294901760
        %v1418 = vsub.f32 %v1038, %v1417
        %v1419 = vand.u32 %v1418, 4294901760
        %v1420 = vsub.f32 %v1418, %v1419
        %v1421 = vand.u32 %v1420, 4294901760
        %1422 = vmatmul.f32.gmra.mxu0 %v1421
        %v1423 = vpop.f32.mrf.mxu0
        %v1424 = vadd.f32 0.0, %v1423
        %v1425 = vand.u32 %v1040, 4294901760
        %v1426 = vsub.f32 %v1040, %v1425
        %v1427 = vand.u32 %v1426, 4294901760
        %v1428 = vsub.f32 %v1426, %v1427
        %v1429 = vand.u32 %v1428, 4294901760
        %1430 = vmatmul.f32.gmra.mxu0 %v1429
        %v1431 = vpop.f32.mrf.mxu0
        %v1432 = vadd.f32 0.0, %v1431
        %v1433 = vand.u32 %v1042, 4294901760
        %v1434 = vsub.f32 %v1042, %v1433
        %v1435 = vand.u32 %v1434, 4294901760
        %v1436 = vsub.f32 %v1434, %v1435
        %v1437 = vand.u32 %v1436, 4294901760
        %1438 = vmatmul.f32.gmra.mxu0 %v1437
        %v1439 = vpop.f32.mrf.mxu0
        %v1440 = vadd.f32 0.0, %v1439
        %v1441 = vand.u32 %v1044, 4294901760
        %v1442 = vsub.f32 %v1044, %v1441
        %v1443 = vand.u32 %v1442, 4294901760
        %v1444 = vsub.f32 %v1442, %v1443
        %v1445 = vand.u32 %v1444, 4294901760
        %1446 = vmatmul.f32.gmra.mxu0 %v1445
        %v1447 = vpop.f32.mrf.mxu0
        %v1448 = vadd.f32 0.0, %v1447
        %1449 = vdwg.mxu0
        %1450 = vmatpush.xpose.msra.mxu0 0.0
        %1451 = vmatpush.xpose.msra.mxu0 0.0
        %1452 = vmatpush.xpose.msra.mxu0 0.0
        %1453 = vmatpush.xpose.msra.mxu0 0.0
        %1454 = vmatpush.xpose.msra.mxu0 0.0
        %1455 = vmatpush.xpose.msra.mxu0 0.0
        %1456 = vmatpush.xpose.msra.mxu0 0.0
        %1457 = vmatpush.xpose.msra.mxu0 0.0
        %1458 = vmatpush.xpose.msra.mxu0 0.0
        %1459 = vmatpush.xpose.msra.mxu0 0.0
        %1460 = vmatpush.xpose.msra.mxu0 0.0
        %1461 = vmatpush.xpose.msra.mxu0 0.0
        %v1462 = vand.u32 %v202, 4294901760
        %v1463 = vsub.f32 %v202, %v1462
        %v1464 = vand.u32 %v1463, 4294901760
        %v1465 = vsub.f32 %v1463, %v1464
        %v1466 = vand.u32 %v1465, 4294901760
        %1467 = vmatpush.xpose.msra.mxu0 %v1466
        %v1468 = vand.u32 %v201, 4294901760
        %v1469 = vsub.f32 %v201, %v1468
        %v1470 = vand.u32 %v1469, 4294901760
        %v1471 = vsub.f32 %v1469, %v1470
        %v1472 = vand.u32 %v1471, 4294901760
        %1473 = vmatpush.xpose.msra.mxu0 %v1472
        %v1474 = vand.u32 %v200, 4294901760
        %v1475 = vsub.f32 %v200, %v1474
        %v1476 = vand.u32 %v1475, 4294901760
        %v1477 = vsub.f32 %v1475, %v1476
        %v1478 = vand.u32 %v1477, 4294901760
        %1479 = vmatpush.xpose.msra.mxu0 %v1478
        %v1480 = vand.u32 %v199, 4294901760
        %v1481 = vsub.f32 %v199, %v1480
        %v1482 = vand.u32 %v1481, 4294901760
        %v1483 = vsub.f32 %v1481, %v1482
        %v1484 = vand.u32 %v1483, 4294901760
        %1485 = vmatpush.xpose.msra.mxu0 %v1484
        %v1486 = vand.u32 %v1014, 4294901760
        %1487 = vmatmul.f32.gmra.mxu0 %v1486
        %v1488 = vpop.f32.mrf.mxu0
        %v1489 = vadd.f32 %v1328, %v1488
        %v1490 = vand.u32 %v1016, 4294901760
        %1491 = vmatmul.f32.gmra.mxu0 %v1490
        %v1492 = vpop.f32.mrf.mxu0
        %v1493 = vadd.f32 %v1336, %v1492
        %v1494 = vand.u32 %v1018, 4294901760
        %1495 = vmatmul.f32.gmra.mxu0 %v1494
        %v1496 = vpop.f32.mrf.mxu0
        %v1497 = vadd.f32 %v1344, %v1496
        %v1498 = vand.u32 %v1020, 4294901760
        %1499 = vmatmul.f32.gmra.mxu0 %v1498
        %v1500 = vpop.f32.mrf.mxu0
        %v1501 = vadd.f32 %v1352, %v1500
        %v1502 = vand.u32 %v1022, 4294901760
        %1503 = vmatmul.f32.gmra.mxu0 %v1502
        %v1504 = vpop.f32.mrf.mxu0
        %v1505 = vadd.f32 %v1360, %v1504
        %v1506 = vand.u32 %v1024, 4294901760
        %1507 = vmatmul.f32.gmra.mxu0 %v1506
        %v1508 = vpop.f32.mrf.mxu0
        %v1509 = vadd.f32 %v1368, %v1508
        %v1510 = vand.u32 %v1026, 4294901760
        %1511 = vmatmul.f32.gmra.mxu0 %v1510
        %v1512 = vpop.f32.mrf.mxu0
        %v1513 = vadd.f32 %v1376, %v1512
        %v1514 = vand.u32 %v1028, 4294901760
        %1515 = vmatmul.f32.gmra.mxu0 %v1514
        %v1516 = vpop.f32.mrf.mxu0
        %v1517 = vadd.f32 %v1384, %v1516
        %v1518 = vand.u32 %v1030, 4294901760
        %1519 = vmatmul.f32.gmra.mxu0 %v1518
        %v1520 = vpop.f32.mrf.mxu0
        %v1521 = vadd.f32 %v1392, %v1520
        %v1522 = vand.u32 %v1032, 4294901760
        %1523 = vmatmul.f32.gmra.mxu0 %v1522
        %v1524 = vpop.f32.mrf.mxu0
        %v1525 = vadd.f32 %v1400, %v1524
        %v1526 = vand.u32 %v1034, 4294901760
        %1527 = vmatmul.f32.gmra.mxu0 %v1526
        %v1528 = vpop.f32.mrf.mxu0
        %v1529 = vadd.f32 %v1408, %v1528
        %v1530 = vand.u32 %v1036, 4294901760
        %1531 = vmatmul.f32.gmra.mxu0 %v1530
        %v1532 = vpop.f32.mrf.mxu0
        %v1533 = vadd.f32 %v1416, %v1532
        %v1534 = vand.u32 %v1038, 4294901760
        %1535 = vmatmul.f32.gmra.mxu0 %v1534
        %v1536 = vpop.f32.mrf.mxu0
        %v1537 = vadd.f32 %v1424, %v1536
        %v1538 = vand.u32 %v1040, 4294901760
        %1539 = vmatmul.f32.gmra.mxu0 %v1538
        %v1540 = vpop.f32.mrf.mxu0
        %v1541 = vadd.f32 %v1432, %v1540
        %v1542 = vand.u32 %v1042, 4294901760
        %1543 = vmatmul.f32.gmra.mxu0 %v1542
        %v1544 = vpop.f32.mrf.mxu0
        %v1545 = vadd.f32 %v1440, %v1544
        %v1546 = vand.u32 %v1044, 4294901760
        %1547 = vmatmul.f32.gmra.mxu0 %v1546
        %v1548 = vpop.f32.mrf.mxu0
        %v1549 = vadd.f32 %v1448, %v1548
        %1550 = vdwg.mxu0
        %1551 = vmatpush.xpose.msra.mxu0 0.0
        %1552 = vmatpush.xpose.msra.mxu0 0.0
        %1553 = vmatpush.xpose.msra.mxu0 0.0
        %1554 = vmatpush.xpose.msra.mxu0 0.0
        %1555 = vmatpush.xpose.msra.mxu0 0.0
        %1556 = vmatpush.xpose.msra.mxu0 0.0
        %1557 = vmatpush.xpose.msra.mxu0 0.0
        %1558 = vmatpush.xpose.msra.mxu0 0.0
        %1559 = vmatpush.xpose.msra.mxu0 0.0
        %1560 = vmatpush.xpose.msra.mxu0 0.0
        %1561 = vmatpush.xpose.msra.mxu0 0.0
        %1562 = vmatpush.xpose.msra.mxu0 0.0
        %v1563 = vand.u32 %v202, 4294901760
        %v1564 = vsub.f32 %v202, %v1563
        %1565 = vmatpush.xpose.msra.mxu0 %v1564
        %v1566 = vand.u32 %v201, 4294901760
        %v1567 = vsub.f32 %v201, %v1566
        %1568 = vmatpush.xpose.msra.mxu0 %v1567
        %v1569 = vand.u32 %v200, 4294901760
        %v1570 = vsub.f32 %v200, %v1569
        %1571 = vmatpush.xpose.msra.mxu0 %v1570
        %v1572 = vand.u32 %v199, 4294901760
        %v1573 = vsub.f32 %v199, %v1572
        %1574 = vmatpush.xpose.msra.mxu0 %v1573
        %v1575 = vand.u32 %v1014, 4294901760
        %v1576 = vsub.f32 %v1014, %v1575
        %1577 = vmatmul.f32.gmra.mxu0 %v1576
        %v1578 = vpop.f32.mrf.mxu0
        %v1579 = vadd.f32 %v1489, %v1578
        %v1580 = vand.u32 %v1016, 4294901760
        %v1581 = vsub.f32 %v1016, %v1580
        %1582 = vmatmul.f32.gmra.mxu0 %v1581
        %v1583 = vpop.f32.mrf.mxu0
        %v1584 = vadd.f32 %v1493, %v1583
        %v1585 = vand.u32 %v1018, 4294901760
        %v1586 = vsub.f32 %v1018, %v1585
        %1587 = vmatmul.f32.gmra.mxu0 %v1586
        %v1588 = vpop.f32.mrf.mxu0
        %v1589 = vadd.f32 %v1497, %v1588
        %v1590 = vand.u32 %v1020, 4294901760
        %v1591 = vsub.f32 %v1020, %v1590
        %1592 = vmatmul.f32.gmra.mxu0 %v1591
        %v1593 = vpop.f32.mrf.mxu0
        %v1594 = vadd.f32 %v1501, %v1593
        %v1595 = vand.u32 %v1022, 4294901760
        %v1596 = vsub.f32 %v1022, %v1595
        %1597 = vmatmul.f32.gmra.mxu0 %v1596
        %v1598 = vpop.f32.mrf.mxu0
        %v1599 = vadd.f32 %v1505, %v1598
        %v1600 = vand.u32 %v1024, 4294901760
        %v1601 = vsub.f32 %v1024, %v1600
        %1602 = vmatmul.f32.gmra.mxu0 %v1601
        %v1603 = vpop.f32.mrf.mxu0
        %v1604 = vadd.f32 %v1509, %v1603
        %v1605 = vand.u32 %v1026, 4294901760
        %v1606 = vsub.f32 %v1026, %v1605
        %1607 = vmatmul.f32.gmra.mxu0 %v1606
        %v1608 = vpop.f32.mrf.mxu0
        %v1609 = vadd.f32 %v1513, %v1608
        %v1610 = vand.u32 %v1028, 4294901760
        %v1611 = vsub.f32 %v1028, %v1610
        %1612 = vmatmul.f32.gmra.mxu0 %v1611
        %v1613 = vpop.f32.mrf.mxu0
        %v1614 = vadd.f32 %v1517, %v1613
        %v1615 = vand.u32 %v1030, 4294901760
        %v1616 = vsub.f32 %v1030, %v1615
        %1617 = vmatmul.f32.gmra.mxu0 %v1616
        %v1618 = vpop.f32.mrf.mxu0
        %v1619 = vadd.f32 %v1521, %v1618
        %v1620 = vand.u32 %v1032, 4294901760
        %v1621 = vsub.f32 %v1032, %v1620
        %1622 = vmatmul.f32.gmra.mxu0 %v1621
        %v1623 = vpop.f32.mrf.mxu0
        %v1624 = vadd.f32 %v1525, %v1623
        %v1625 = vand.u32 %v1034, 4294901760
        %v1626 = vsub.f32 %v1034, %v1625
        %1627 = vmatmul.f32.gmra.mxu0 %v1626
        %v1628 = vpop.f32.mrf.mxu0
        %v1629 = vadd.f32 %v1529, %v1628
        %v1630 = vand.u32 %v1036, 4294901760
        %v1631 = vsub.f32 %v1036, %v1630
        %1632 = vmatmul.f32.gmra.mxu0 %v1631
        %v1633 = vpop.f32.mrf.mxu0
        %v1634 = vadd.f32 %v1533, %v1633
        %v1635 = vand.u32 %v1038, 4294901760
        %v1636 = vsub.f32 %v1038, %v1635
        %1637 = vmatmul.f32.gmra.mxu0 %v1636
        %v1638 = vpop.f32.mrf.mxu0
        %v1639 = vadd.f32 %v1537, %v1638
        %v1640 = vand.u32 %v1040, 4294901760
        %v1641 = vsub.f32 %v1040, %v1640
        %1642 = vmatmul.f32.gmra.mxu0 %v1641
        %v1643 = vpop.f32.mrf.mxu0
        %v1644 = vadd.f32 %v1541, %v1643
        %v1645 = vand.u32 %v1042, 4294901760
        %v1646 = vsub.f32 %v1042, %v1645
        %1647 = vmatmul.f32.gmra.mxu0 %v1646
        %v1648 = vpop.f32.mrf.mxu0
        %v1649 = vadd.f32 %v1545, %v1648
        %v1650 = vand.u32 %v1044, 4294901760
        %v1651 = vsub.f32 %v1044, %v1650
        %1652 = vmatmul.f32.gmra.mxu0 %v1651
        %v1653 = vpop.f32.mrf.mxu0
        %v1654 = vadd.f32 %v1549, %v1653
        %1655 = vdwg.mxu0
        %1656 = vmatpush.xpose.msra.mxu0 0.0
        %1657 = vmatpush.xpose.msra.mxu0 0.0
        %1658 = vmatpush.xpose.msra.mxu0 0.0
        %1659 = vmatpush.xpose.msra.mxu0 0.0
        %1660 = vmatpush.xpose.msra.mxu0 0.0
        %1661 = vmatpush.xpose.msra.mxu0 0.0
        %1662 = vmatpush.xpose.msra.mxu0 0.0
        %1663 = vmatpush.xpose.msra.mxu0 0.0
        %1664 = vmatpush.xpose.msra.mxu0 0.0
        %1665 = vmatpush.xpose.msra.mxu0 0.0
        %1666 = vmatpush.xpose.msra.mxu0 0.0
        %1667 = vmatpush.xpose.msra.mxu0 0.0
        %v1668 = vand.u32 %v202, 4294901760
        %1669 = vmatpush.xpose.msra.mxu0 %v1668
        %v1670 = vand.u32 %v201, 4294901760
        %1671 = vmatpush.xpose.msra.mxu0 %v1670
        %v1672 = vand.u32 %v200, 4294901760
        %1673 = vmatpush.xpose.msra.mxu0 %v1672
        %v1674 = vand.u32 %v199, 4294901760
        %1675 = vmatpush.xpose.msra.mxu0 %v1674
        %v1676 = vand.u32 %v1014, 4294901760
        %v1677 = vsub.f32 %v1014, %v1676
        %v1678 = vand.u32 %v1677, 4294901760
        %1679 = vmatmul.f32.gmra.mxu0 %v1678
        %v1680 = vpop.f32.mrf.mxu0
        %v1681 = vadd.f32 %v1579, %v1680
        %v1682 = vand.u32 %v1016, 4294901760
        %v1683 = vsub.f32 %v1016, %v1682
        %v1684 = vand.u32 %v1683, 4294901760
        %1685 = vmatmul.f32.gmra.mxu0 %v1684
        %v1686 = vpop.f32.mrf.mxu0
        %v1687 = vadd.f32 %v1584, %v1686
        %v1688 = vand.u32 %v1018, 4294901760
        %v1689 = vsub.f32 %v1018, %v1688
        %v1690 = vand.u32 %v1689, 4294901760
        %1691 = vmatmul.f32.gmra.mxu0 %v1690
        %v1692 = vpop.f32.mrf.mxu0
        %v1693 = vadd.f32 %v1589, %v1692
        %v1694 = vand.u32 %v1020, 4294901760
        %v1695 = vsub.f32 %v1020, %v1694
        %v1696 = vand.u32 %v1695, 4294901760
        %1697 = vmatmul.f32.gmra.mxu0 %v1696
        %v1698 = vpop.f32.mrf.mxu0
        %v1699 = vadd.f32 %v1594, %v1698
        %v1700 = vand.u32 %v1022, 4294901760
        %v1701 = vsub.f32 %v1022, %v1700
        %v1702 = vand.u32 %v1701, 4294901760
        %1703 = vmatmul.f32.gmra.mxu0 %v1702
        %v1704 = vpop.f32.mrf.mxu0
        %v1705 = vadd.f32 %v1599, %v1704
        %v1706 = vand.u32 %v1024, 4294901760
        %v1707 = vsub.f32 %v1024, %v1706
        %v1708 = vand.u32 %v1707, 4294901760
        %1709 = vmatmul.f32.gmra.mxu0 %v1708
        %v1710 = vpop.f32.mrf.mxu0
        %v1711 = vadd.f32 %v1604, %v1710
        %v1712 = vand.u32 %v1026, 4294901760
        %v1713 = vsub.f32 %v1026, %v1712
        %v1714 = vand.u32 %v1713, 4294901760
        %1715 = vmatmul.f32.gmra.mxu0 %v1714
        %v1716 = vpop.f32.mrf.mxu0
        %v1717 = vadd.f32 %v1609, %v1716
        %v1718 = vand.u32 %v1028, 4294901760
        %v1719 = vsub.f32 %v1028, %v1718
        %v1720 = vand.u32 %v1719, 4294901760
        %1721 = vmatmul.f32.gmra.mxu0 %v1720
        %v1722 = vpop.f32.mrf.mxu0
        %v1723 = vadd.f32 %v1614, %v1722
        %v1724 = vand.u32 %v1030, 4294901760
        %v1725 = vsub.f32 %v1030, %v1724
        %v1726 = vand.u32 %v1725, 4294901760
        %1727 = vmatmul.f32.gmra.mxu0 %v1726
        %v1728 = vpop.f32.mrf.mxu0
        %v1729 = vadd.f32 %v1619, %v1728
        %v1730 = vand.u32 %v1032, 4294901760
        %v1731 = vsub.f32 %v1032, %v1730
        %v1732 = vand.u32 %v1731, 4294901760
        %1733 = vmatmul.f32.gmra.mxu0 %v1732
        %v1734 = vpop.f32.mrf.mxu0
        %v1735 = vadd.f32 %v1624, %v1734
        %v1736 = vand.u32 %v1034, 4294901760
        %v1737 = vsub.f32 %v1034, %v1736
        %v1738 = vand.u32 %v1737, 4294901760
        %1739 = vmatmul.f32.gmra.mxu0 %v1738
        %v1740 = vpop.f32.mrf.mxu0
        %v1741 = vadd.f32 %v1629, %v1740
        %v1742 = vand.u32 %v1036, 4294901760
        %v1743 = vsub.f32 %v1036, %v1742
        %v1744 = vand.u32 %v1743, 4294901760
        %1745 = vmatmul.f32.gmra.mxu0 %v1744
        %v1746 = vpop.f32.mrf.mxu0
        %v1747 = vadd.f32 %v1634, %v1746
        %v1748 = vand.u32 %v1038, 4294901760
        %v1749 = vsub.f32 %v1038, %v1748
        %v1750 = vand.u32 %v1749, 4294901760
        %1751 = vmatmul.f32.gmra.mxu0 %v1750
        %v1752 = vpop.f32.mrf.mxu0
        %v1753 = vadd.f32 %v1639, %v1752
        %v1754 = vand.u32 %v1040, 4294901760
        %v1755 = vsub.f32 %v1040, %v1754
        %v1756 = vand.u32 %v1755, 4294901760
        %1757 = vmatmul.f32.gmra.mxu0 %v1756
        %v1758 = vpop.f32.mrf.mxu0
        %v1759 = vadd.f32 %v1644, %v1758
        %v1760 = vand.u32 %v1042, 4294901760
        %v1761 = vsub.f32 %v1042, %v1760
        %v1762 = vand.u32 %v1761, 4294901760
        %1763 = vmatmul.f32.gmra.mxu0 %v1762
        %v1764 = vpop.f32.mrf.mxu0
        %v1765 = vadd.f32 %v1649, %v1764
        %v1766 = vand.u32 %v1044, 4294901760
        %v1767 = vsub.f32 %v1044, %v1766
        %v1768 = vand.u32 %v1767, 4294901760
        %1769 = vmatmul.f32.gmra.mxu0 %v1768
        %v1770 = vpop.f32.mrf.mxu0
        %v1771 = vadd.f32 %v1654, %v1770
        %1772 = vdwg.mxu0
        %1773 = vmatpush.xpose.msra.mxu0 0.0
        %1774 = vmatpush.xpose.msra.mxu0 0.0
        %1775 = vmatpush.xpose.msra.mxu0 0.0
        %1776 = vmatpush.xpose.msra.mxu0 0.0
        %1777 = vmatpush.xpose.msra.mxu0 0.0
        %1778 = vmatpush.xpose.msra.mxu0 0.0
        %1779 = vmatpush.xpose.msra.mxu0 0.0
        %1780 = vmatpush.xpose.msra.mxu0 0.0
        %1781 = vmatpush.xpose.msra.mxu0 0.0
        %1782 = vmatpush.xpose.msra.mxu0 0.0
        %1783 = vmatpush.xpose.msra.mxu0 0.0
        %1784 = vmatpush.xpose.msra.mxu0 0.0
        %v1785 = vand.u32 %v202, 4294901760
        %v1786 = vsub.f32 %v202, %v1785
        %v1787 = vand.u32 %v1786, 4294901760
        %1788 = vmatpush.xpose.msra.mxu0 %v1787
        %v1789 = vand.u32 %v201, 4294901760
        %v1790 = vsub.f32 %v201, %v1789
        %v1791 = vand.u32 %v1790, 4294901760
        %1792 = vmatpush.xpose.msra.mxu0 %v1791
        %v1793 = vand.u32 %v200, 4294901760
        %v1794 = vsub.f32 %v200, %v1793
        %v1795 = vand.u32 %v1794, 4294901760
        %1796 = vmatpush.xpose.msra.mxu0 %v1795
        %v1797 = vand.u32 %v199, 4294901760
        %v1798 = vsub.f32 %v199, %v1797
        %v1799 = vand.u32 %v1798, 4294901760
        %1800 = vmatpush.xpose.msra.mxu0 %v1799
        %v1801 = vand.u32 %v1014, 4294901760
        %1802 = vmatmul.f32.gmra.mxu0 %v1801
        %v1803 = vpop.f32.mrf.mxu0
        %v1804 = vadd.f32 %v1681, %v1803
        %v1805 = vand.u32 %v1016, 4294901760
        %1806 = vmatmul.f32.gmra.mxu0 %v1805
        %v1807 = vpop.f32.mrf.mxu0
        %v1808 = vadd.f32 %v1687, %v1807
        %v1809 = vand.u32 %v1018, 4294901760
        %1810 = vmatmul.f32.gmra.mxu0 %v1809
        %v1811 = vpop.f32.mrf.mxu0
        %v1812 = vadd.f32 %v1693, %v1811
        %v1813 = vand.u32 %v1020, 4294901760
        %1814 = vmatmul.f32.gmra.mxu0 %v1813
        %v1815 = vpop.f32.mrf.mxu0
        %v1816 = vadd.f32 %v1699, %v1815
        %v1817 = vand.u32 %v1022, 4294901760
        %1818 = vmatmul.f32.gmra.mxu0 %v1817
        %v1819 = vpop.f32.mrf.mxu0
        %v1820 = vadd.f32 %v1705, %v1819
        %v1821 = vand.u32 %v1024, 4294901760
        %1822 = vmatmul.f32.gmra.mxu0 %v1821
        %v1823 = vpop.f32.mrf.mxu0
        %v1824 = vadd.f32 %v1711, %v1823
        %v1825 = vand.u32 %v1026, 4294901760
        %1826 = vmatmul.f32.gmra.mxu0 %v1825
        %v1827 = vpop.f32.mrf.mxu0
        %v1828 = vadd.f32 %v1717, %v1827
        %v1829 = vand.u32 %v1028, 4294901760
        %1830 = vmatmul.f32.gmra.mxu0 %v1829
        %v1831 = vpop.f32.mrf.mxu0
        %v1832 = vadd.f32 %v1723, %v1831
        %v1833 = vand.u32 %v1030, 4294901760
        %1834 = vmatmul.f32.gmra.mxu0 %v1833
        %v1835 = vpop.f32.mrf.mxu0
        %v1836 = vadd.f32 %v1729, %v1835
        %v1837 = vand.u32 %v1032, 4294901760
        %1838 = vmatmul.f32.gmra.mxu0 %v1837
        %v1839 = vpop.f32.mrf.mxu0
        %v1840 = vadd.f32 %v1735, %v1839
        %v1841 = vand.u32 %v1034, 4294901760
        %1842 = vmatmul.f32.gmra.mxu0 %v1841
        %v1843 = vpop.f32.mrf.mxu0
        %v1844 = vadd.f32 %v1741, %v1843
        %v1845 = vand.u32 %v1036, 4294901760
        %1846 = vmatmul.f32.gmra.mxu0 %v1845
        %v1847 = vpop.f32.mrf.mxu0
        %v1848 = vadd.f32 %v1747, %v1847
        %v1849 = vand.u32 %v1038, 4294901760
        %1850 = vmatmul.f32.gmra.mxu0 %v1849
        %v1851 = vpop.f32.mrf.mxu0
        %v1852 = vadd.f32 %v1753, %v1851
        %v1853 = vand.u32 %v1040, 4294901760
        %1854 = vmatmul.f32.gmra.mxu0 %v1853
        %v1855 = vpop.f32.mrf.mxu0
        %v1856 = vadd.f32 %v1759, %v1855
        %v1857 = vand.u32 %v1042, 4294901760
        %1858 = vmatmul.f32.gmra.mxu0 %v1857
        %v1859 = vpop.f32.mrf.mxu0
        %v1860 = vadd.f32 %v1765, %v1859
        %v1861 = vand.u32 %v1044, 4294901760
        %1862 = vmatmul.f32.gmra.mxu0 %v1861
        %v1863 = vpop.f32.mrf.mxu0
        %v1864 = vadd.f32 %v1771, %v1863
        %1865 = vdwg.mxu0
        %1866 = vmatpush.xpose.msra.mxu0 0.0
        %1867 = vmatpush.xpose.msra.mxu0 0.0
        %1868 = vmatpush.xpose.msra.mxu0 0.0
        %1869 = vmatpush.xpose.msra.mxu0 0.0
        %1870 = vmatpush.xpose.msra.mxu0 0.0
        %1871 = vmatpush.xpose.msra.mxu0 0.0
        %1872 = vmatpush.xpose.msra.mxu0 0.0
        %1873 = vmatpush.xpose.msra.mxu0 0.0
        %1874 = vmatpush.xpose.msra.mxu0 0.0
        %1875 = vmatpush.xpose.msra.mxu0 0.0
        %1876 = vmatpush.xpose.msra.mxu0 0.0
        %1877 = vmatpush.xpose.msra.mxu0 0.0
        %v1878 = vand.u32 %v202, 4294901760
        %1879 = vmatpush.xpose.msra.mxu0 %v1878
        %v1880 = vand.u32 %v201, 4294901760
        %1881 = vmatpush.xpose.msra.mxu0 %v1880
        %v1882 = vand.u32 %v200, 4294901760
        %1883 = vmatpush.xpose.msra.mxu0 %v1882
        %v1884 = vand.u32 %v199, 4294901760
        %1885 = vmatpush.xpose.msra.mxu0 %v1884
        %v1886 = vand.u32 %v1014, 4294901760
        %1887 = vmatmul.f32.gmra.mxu0 %v1886
        %v1888 = vpop.f32.mrf.mxu0
        %v1889 = vadd.f32 %v1804, %v1888
        %v1890 = vand.u32 %v1016, 4294901760
        %1891 = vmatmul.f32.gmra.mxu0 %v1890
        %v1892 = vpop.f32.mrf.mxu0
        %v1893 = vadd.f32 %v1808, %v1892
        %v1894 = vand.u32 %v1018, 4294901760
        %1895 = vmatmul.f32.gmra.mxu0 %v1894
        %v1896 = vpop.f32.mrf.mxu0
        %v1897 = vadd.f32 %v1812, %v1896
        %v1898 = vand.u32 %v1020, 4294901760
        %1899 = vmatmul.f32.gmra.mxu0 %v1898
        %v1900 = vpop.f32.mrf.mxu0
        %v1901 = vadd.f32 %v1816, %v1900
        %v1902 = vand.u32 %v1022, 4294901760
        %1903 = vmatmul.f32.gmra.mxu0 %v1902
        %v1904 = vpop.f32.mrf.mxu0
        %v1905 = vadd.f32 %v1820, %v1904
        %v1906 = vand.u32 %v1024, 4294901760
        %1907 = vmatmul.f32.gmra.mxu0 %v1906
        %v1908 = vpop.f32.mrf.mxu0
        %v1909 = vadd.f32 %v1824, %v1908
        %v1910 = vand.u32 %v1026, 4294901760
        %1911 = vmatmul.f32.gmra.mxu0 %v1910
        %v1912 = vpop.f32.mrf.mxu0
        %v1913 = vadd.f32 %v1828, %v1912
        %v1914 = vand.u32 %v1028, 4294901760
        %1915 = vmatmul.f32.gmra.mxu0 %v1914
        %v1916 = vpop.f32.mrf.mxu0
        %v1917 = vadd.f32 %v1832, %v1916
        %v1918 = vand.u32 %v1030, 4294901760
        %1919 = vmatmul.f32.gmra.mxu0 %v1918
        %v1920 = vpop.f32.mrf.mxu0
        %v1921 = vadd.f32 %v1836, %v1920
        %v1922 = vand.u32 %v1032, 4294901760
        %1923 = vmatmul.f32.gmra.mxu0 %v1922
        %v1924 = vpop.f32.mrf.mxu0
        %v1925 = vadd.f32 %v1840, %v1924
        %v1926 = vand.u32 %v1034, 4294901760
        %1927 = vmatmul.f32.gmra.mxu0 %v1926
        %v1928 = vpop.f32.mrf.mxu0
        %v1929 = vadd.f32 %v1844, %v1928
        %v1930 = vand.u32 %v1036, 4294901760
        %1931 = vmatmul.f32.gmra.mxu0 %v1930
        %v1932 = vpop.f32.mrf.mxu0
        %v1933 = vadd.f32 %v1848, %v1932
        %v1934 = vand.u32 %v1038, 4294901760
        %1935 = vmatmul.f32.gmra.mxu0 %v1934
        %v1936 = vpop.f32.mrf.mxu0
        %v1937 = vadd.f32 %v1852, %v1936
        %v1938 = vand.u32 %v1040, 4294901760
        %1939 = vmatmul.f32.gmra.mxu0 %v1938
        %v1940 = vpop.f32.mrf.mxu0
        %v1941 = vadd.f32 %v1856, %v1940
        %v1942 = vand.u32 %v1042, 4294901760
        %1943 = vmatmul.f32.gmra.mxu0 %v1942
        %v1944 = vpop.f32.mrf.mxu0
        %v1945 = vadd.f32 %v1860, %v1944
        %v1946 = vand.u32 %v1044, 4294901760
        %1947 = vmatmul.f32.gmra.mxu0 %v1946
        %v1948 = vpop.f32.mrf.mxu0
        %v1949 = vadd.f32 %v1864, %v1948
        %1950 = vdwg.mxu0
        %v1951 = vmul.f32 %v1889, %v1090
        %v1952 = vmul.f32 %v1893, %v1104
        %v1953 = vmul.f32 %v1897, %v1118
        %v1954 = vmul.f32 %v1901, %v1132
        %v1955 = vmul.f32 %v1905, %v1146
        %v1956 = vmul.f32 %v1909, %v1160
        %v1957 = vmul.f32 %v1913, %v1174
        %v1958 = vmul.f32 %v1917, %v1188
        %v1959 = vmul.f32 %v1921, %v1202
        %v1960 = vmul.f32 %v1925, %v1216
        %v1961 = vmul.f32 %v1929, %v1230
        %v1962 = vmul.f32 %v1933, %v1244
        %v1963 = vmul.f32 %v1937, %v1258
        %v1964 = vmul.f32 %v1941, %v1272
        %v1965 = vmul.f32 %v1945, %v1286
        %v1966 = vmul.f32 %v1949, %v1300
        %1967 = vst.msk [vmem:[%s192] sm:$0xff] %vm242, %v1951
        %1968 = vst.msk [vmem:[%s192 + $0x8] sm:$0xff] %vm242, %v1952
        %1969 = vst.msk [vmem:[%s192 + $0x10] sm:$0xff] %vm242, %v1953
        %1970 = vst.msk [vmem:[%s192 + $0x18] sm:$0xff] %vm242, %v1954
        %1971 = vst.msk [vmem:[%s192 + $0x20] sm:$0xff] %vm242, %v1955
        %1972 = vst.msk [vmem:[%s192 + $0x28] sm:$0xff] %vm242, %v1956
        %1973 = vst.msk [vmem:[%s192 + $0x30] sm:$0xff] %vm242, %v1957
        %1974 = vst.msk [vmem:[%s192 + $0x38] sm:$0xff] %vm242, %v1958
        %1975 = vst.msk [vmem:[%s192 + $0x40] sm:$0xff] %vm242, %v1959
        %1976 = vst.msk [vmem:[%s192 + $0x48] sm:$0xff] %vm242, %v1960
        %1977 = vst.msk [vmem:[%s192 + $0x50] sm:$0xff] %vm242, %v1961
        %1978 = vst.msk [vmem:[%s192 + $0x58] sm:$0xff] %vm242, %v1962
        %1979 = vst.msk [vmem:[%s192 + $0x60] sm:$0xff] %vm242, %v1963
        %1980 = vst.msk [vmem:[%s192 + $0x68] sm:$0xff] %vm242, %v1964
        %1981 = vst.msk [vmem:[%s192 + $0x70] sm:$0xff] %vm242, %v1965
        %1982 = vst.msk [vmem:[%s192 + $0x78] sm:$0xff] %vm242, %v1966
        %v1983 = vmul.f32 %v1014, %v1090
        %v1984 = vmul.f32 %v1016, %v1104
        %v1985 = vmul.f32 %v1018, %v1118
        %v1986 = vmul.f32 %v1020, %v1132
        %v1987 = vmul.f32 %v1022, %v1146
        %v1988 = vmul.f32 %v1024, %v1160
        %v1989 = vmul.f32 %v1026, %v1174
        %v1990 = vmul.f32 %v1028, %v1188
        %v1991 = vmul.f32 %v1030, %v1202
        %v1992 = vmul.f32 %v1032, %v1216
        %v1993 = vmul.f32 %v1034, %v1230
        %v1994 = vmul.f32 %v1036, %v1244
        %v1995 = vmul.f32 %v1038, %v1258
        %v1996 = vmul.f32 %v1040, %v1272
        %v1997 = vmul.f32 %v1042, %v1286
        %v1998 = vmul.f32 %v1044, %v1300
        %v1999 = vpack.c.bf16 %v1983, %v1983
        %v2000 = vpack.c.bf16 %v1984, %v1984
        %v2001 = vpack.c.bf16 %v1985, %v1985
        %v2002 = vpack.c.bf16 %v1986, %v1986
        %v2003 = vpack.c.bf16 %v1987, %v1987
        %v2004 = vpack.c.bf16 %v1988, %v1988
        %v2005 = vpack.c.bf16 %v1989, %v1989
        %v2006 = vpack.c.bf16 %v1990, %v1990
        %v2007 = vpack.c.bf16 %v1991, %v1991
        %v2008 = vpack.c.bf16 %v1992, %v1992
        %v2009 = vpack.c.bf16 %v1993, %v1993
        %v2010 = vpack.c.bf16 %v1994, %v1994
        %v2011 = vpack.c.bf16 %v1995, %v1995
        %v2012 = vpack.c.bf16 %v1996, %v1996
        %v2013 = vpack.c.bf16 %v1997, %v1997
        %v2014 = vpack.c.bf16 %v1998, %v1998
        %2015 = vst [vmem:[%s183] sm:$0xf] %v1999
        %2016 = vst [vmem:[%s183 + $0x4] sm:$0xf] %v2000
        %2017 = vst [vmem:[%s183 + $0x8] sm:$0xf] %v2001
        %2018 = vst [vmem:[%s183 + $0xc] sm:$0xf] %v2002
        %2019 = vst [vmem:[%s183 + $0x10] sm:$0xf] %v2003
        %2020 = vst [vmem:[%s183 + $0x14] sm:$0xf] %v2004
        %2021 = vst [vmem:[%s183 + $0x18] sm:$0xf] %v2005
        %2022 = vst [vmem:[%s183 + $0x1c] sm:$0xf] %v2006
        %2023 = vst [vmem:[%s183 + $0x20] sm:$0xf] %v2007
        %2024 = vst [vmem:[%s183 + $0x24] sm:$0xf] %v2008
        %2025 = vst [vmem:[%s183 + $0x28] sm:$0xf] %v2009
        %2026 = vst [vmem:[%s183 + $0x2c] sm:$0xf] %v2010
        %2027 = vst [vmem:[%s183 + $0x30] sm:$0xf] %v2011
        %2028 = vst [vmem:[%s183 + $0x34] sm:$0xf] %v2012
        %2029 = vst [vmem:[%s183 + $0x38] sm:$0xf] %v2013
        %2030 = vst [vmem:[%s183 + $0x3c] sm:$0xf] %v2014
        %s2031 = smul.u32 16, %s32
        %p2032 = scmp.lt.s32.totalorder %s31, 1
        %s2033 = scalar_select %p2032, %s31, 1
        %p2034 = scmp.lt.s32.totalorder %s2031, 15
        %s2035 = scalar_select %p2034, %s2031, 15
        %s2036 = smul.addr %s2033, 16
        %s2037 = sadd.s32 %s2035, %s2036
        %s2038 = smul.addr %s2037, 8
        %s2039 = scalar_lea.vmem %s2, %s2038
        %s2040 = sand.u32 %s103, 1
        %s2041 = scalar_lea.sflag [#allocation6], %s2040
        %s2042 = sand.u32 %s103, 1
        %s2043 = smul.addr %s2042, 64
        %s2044 = scalar_lea.vmem [#allocation7], %s2043
        // Predicated region
        $region29: #{tpu_custom_call.1} parent=23 // pred_check
          %p2045 = pneg %p85
        $region30: #{tpu_custom_call.1} parent=23 // pred_check_branch
          %2047 = sbr.rel (%p2045) target = $region32
        $region31: #{tpu_custom_call.1} parent=23 // pred_region
          %s2048 = smul.u32 16, %s32
        $region32: #{tpu_custom_call.1} parent=23 // pred_fallthru
          _
        // Predicated region
        $region33: #{tpu_custom_call.1} parent=23 // pred_check
          %p2049 = pneg %p113
        $region34: #{tpu_custom_call.1} parent=23 // pred_check_branch
          %2051 = sbr.rel (%p2049) target = $region36
        $region35: #{tpu_custom_call.1} parent=23 // pred_region
          %s2052 = smul.u32 16, %s32
          %2054 = vsyncadd %s2041, 0
          %s2055 = smul.addr %s31, 16
          %s2056 = sadd.s32 %s2052, %s2055
          %s2057 = smul.addr %s2056, 4
          %s2058 = scalar_lea.hbm %s3, %s2057
          %s2059 = sshll.u32 %s2044, 4
          %s2060 = int_to_ptr.vmem [resolvable:$true] %s2059
          %s2061 = sshll.u32 %s2058, 4
          %s2062 = int_to_ptr.hbm [resolvable:$true] %s2061
          %2067 = dma.vmem_to_hbm [thread:$0]  %s2060, 1024, %s2062, %s2041, 64, 64, 4
        $region36: #{tpu_custom_call.1} parent=23 // pred_fallthru
          _
      $region24: #{tpu_custom_call.1} parent=5 // pred_fallthru
        _
      %p2068 = scmp.le.s32.totalorder 2, %s22
      // Predicated region
      $region37: #{tpu_custom_call.1} parent=5 // pred_check
        %p2069 = pneg %p2068
      $region38: #{tpu_custom_call.1} parent=5 // pred_check_branch
        %2071 = sbr.rel (%p2069) target = $region40
      $region39: #{tpu_custom_call.1} parent=5 // pred_region
        %s2072 = ssub.s32 %s22, 2
        // Predicated region
        $region41: #{tpu_custom_call.1} parent=39 // pred_check
          %p2073 = pneg %p91
        $region42: #{tpu_custom_call.1} parent=39 // pred_check_branch
          %2075 = sbr.rel (%p2073) target = $region44
        $region43: #{tpu_custom_call.1} parent=39 // pred_region
          %s2076 = smul.u32 16, %s34
          %p2077 = scmp.lt.s32.totalorder %s33, 1
          %s2078 = scalar_select %p2077, %s33, 1
          %p2079 = scmp.lt.s32.totalorder %s2076, 15
          %s2080 = scalar_select %p2079, %s2076, 15
          %s2081 = smul.addr %s2078, 16
          %s2082 = sadd.s32 %s2080, %s2081
          %s2083 = smul.addr %s2082, 8
          %s2084 = scalar_lea.vmem %s2, %s2083
        $region44: #{tpu_custom_call.1} parent=39 // pred_fallthru
          _
        // Predicated region
        $region45: #{tpu_custom_call.1} parent=39 // pred_check
          %p2085 = pneg %p119
        $region46: #{tpu_custom_call.1} parent=39 // pred_check_branch
          %2087 = sbr.rel (%p2085) target = $region48
        $region47: #{tpu_custom_call.1} parent=39 // pred_region
          %s2088 = sand.u32 %s104, 1
          %s2089 = scalar_lea.sflag [#allocation6], %s2088
          %s2090 = sand.u32 %s104, 1
          %s2091 = smul.addr %s2090, 64
          %s2092 = scalar_lea.vmem [#allocation7], %s2091
          %2094 = dma.done %s2089, 1024
        $region48: #{tpu_custom_call.1} parent=39 // pred_fallthru
          _
      $region40: #{tpu_custom_call.1} parent=5 // pred_fallthru
        _
    $region6: #{tpu_custom_call.1} parent=1 // loop_footer
      %s26 = sadd.s32 1, %s22
    $region7: #{tpu_custom_call.1} parent=1 // loop_footer_branch
      %21 = sbr.rel target = $region3
    $region8: #{tpu_custom_call.1} parent=1 // loop_exit
      _
    %2095 = vsyncpa [#allocation5], 1
    %s2096 = scalar_lea.sflag [#allocation5], 1
    %2097 = vsyncpa %s2096, 1
    %2098 = vsyncpa [#allocation6], 1
    %s2099 = scalar_lea.sflag [#allocation6], 1
    %2100 = vsyncpa %s2099, 1

</llo_original>
